<compile_context>
chip_gen: v5e
topology: v5e:2x2
jax: 0.10.0
libtpu: 0.0.40
codegen_flags: <defaults>
</compile_context>

<pallas_src>
import jax
import jax.numpy as jnp
from jax.experimental import pallas as pl
from jax.experimental.pallas import tpu as pltpu


# ----------------------------------------------------------------------------
# generation-aware VMEM budget / band sizing
# ----------------------------------------------------------------------------
def _vmem_limit_bytes():
    # v5e/v6e: 128 MiB physical, v7x: 64 MiB.  Leave headroom for the
    # double-buffered pipeline that the BlockSpecs generate.
    try:
        cap = pltpu.get_tpu_info().vmem_capacity_bytes
        return min(int(cap) * 3 // 4, 100 << 20)
    except Exception:
        return 48 << 20                     # conservative: fits every generation


def _choose_band_rows(H, W, cin, cout, itemsize, budget_bytes):
    """Largest divisor of H whose per-band working set fits the budget."""
    best = 1
    for hb in range(1, H + 1):
        if H % hb:
            continue
        est = (
            2 * hb * W * cin * itemsize            # input band, double-buffered
            + 2 * hb * W * cin * itemsize          # identity band (conv2 path)
            + 2 * hb * W * cout * itemsize         # output band, double-buffered
            + (hb + 2) * (W + 2) * cin * itemsize  # padded-band scratch
            + hb * W * cout * 4                    # f32 accumulator
            + 9 * cin * cout * itemsize            # resident weights
        )
        if est <= budget_bytes:
            best = hb
    return best


# ----------------------------------------------------------------------------
# band conv kernel (used for conv1 and conv2)
# ----------------------------------------------------------------------------
def _make_band_conv_kernel(Hb, W, cin, cout, nb, slope, cdtype,
                           in_act, id_mode, idc):
    Mb = Hb * W

    def kernel(*refs):
        it = iter(refs)
        x_main = next(it)                    # (Hb, W, cin)   band rows
        x_top = next(it)                     # (W, cin)       row above the band
        x_bot = next(it)                     # (W, cin)       row below the band
        w_ref = next(it)                     # (9, cin, cout) per-tap weights
        sc_ref = sh_ref = xid_ref = we_ref = None
        if in_act:
            sc_ref = next(it)                # (1, cin) BN1 scale (f32)
            sh_ref = next(it)                # (1, cin) BN1 shift (f32)
        if id_mode is not None:
            xid_ref = next(it)               # (Hb, W, idc) identity band
            if id_mode == "expand":
                we_ref = next(it)            # (idc, cout) fused 1x1 conv_expand
        out_ref = next(it)                   # (Hb, W, cout) pre-BN conv output
        st_ref = next(it)                    # (2, cout)     per-band sum/sumsq
        pad_ref = next(it)                   # (Hb+2, W+2, cin) scratch

        band = pl.program_id(1)

        def prep(v):
            # conv2 path: BN1 (folded scale/shift) + LeakyReLU applied on the
            # fly to the conv input; conv1 path: plain cast.
            if in_act:
                y = v.astype(jnp.float32) * sc_ref[...] + sh_ref[...]
                y = jnp.where(y > 0, y, slope * y)
                return y.astype(cdtype)
            return v.astype(cdtype)

        # One lane-dense zero fill supplies the W halo columns and (at the
        # image edges) the row halos; interior rows are overwritten below.
        pad_ref[...] = jnp.zeros(pad_ref.shape, pad_ref.dtype)
        pad_ref[1:Hb + 1, 1:W + 1, :] = prep(x_main[...])

        @pl.when(band > 0)
        def _():
            pad_ref[0:1, 1:W + 1, :] = prep(x_top[...]).reshape(1, W, cin)

        @pl.when(band < nb - 1)
        def _():
            pad_ref[Hb + 1:Hb + 2, 1:W + 1, :] = (
                prep(x_bot[...]).reshape(1, W, cin))

        # 3x3 conv = 9 accumulated MXU matmuls with K = cin (no im2col slab),
        # f32 accumulation.
        acc = jnp.zeros((Mb, cout), jnp.float32)
        for ky in range(3):
            for kx in range(3):
                tap = pad_ref[ky:ky + Hb, kx:kx + W, :].reshape(Mb, cin)
                acc = acc + jnp.dot(tap, w_ref[ky * 3 + kx],
                                    preferred_element_type=jnp.float32)

        # residual identity, added before BN2 (matches the module)
        if id_mode == "add":
            acc = acc + xid_ref[...].reshape(Mb, idc).astype(jnp.float32)
        elif id_mode == "expand":
            acc = acc + jnp.dot(xid_ref[...].reshape(Mb, idc), we_ref[...],
                                preferred_element_type=jnp.float32)

        # per-band BatchNorm partials (reduced across bands in the wrapper)
        st_ref[0:1, :] = jnp.sum(acc, axis=0, keepdims=True)
        st_ref[1:2, :] = jnp.sum(acc * acc, axis=0, keepdims=True)

        out_ref[...] = acc.reshape(Hb, W, cout).astype(out_ref.dtype)

    return kernel


def _band_conv(x, w_taps, *, scale_shift=None, identity=None, we=None,
               store_dtype, cdtype, band_rows, slope, vmem_limit):
    N, H, W, cin = x.shape
    cout = w_taps.shape[-1]
    Hb = band_rows
    nb = H // Hb
    in_act = scale_shift is not None
    id_mode = None
    if identity is not None:
        id_mode = "expand" if we is not None else "add"

    row_main = lambda n, i: (n, i, 0, 0)
    row_top = lambda n, i: (n, jnp.maximum(i * Hb - 1, 0), 0, 0)
    row_bot = lambda n, i: (n, jnp.minimum((i + 1) * Hb, H - 1), 0, 0)

    inputs = [x, x, x, w_taps]
    in_specs = [
        pl.BlockSpec((None, Hb, W, cin), row_main),
        pl.BlockSpec((None, None, W, cin), row_top),
        pl.BlockSpec((None, None, W, cin), row_bot),
        pl.BlockSpec((9, cin, cout), lambda n, i: (0, 0, 0)),
    ]
    if in_act:
        sc, sh = scale_shift
        inputs += [sc, sh]
        in_specs += [pl.BlockSpec((1, cin), lambda n, i: (0, 0)),
                     pl.BlockSpec((1, cin), lambda n, i: (0, 0))]
    idc = None
    if id_mode is not None:
        idc = identity.shape[-1]
        inputs.append(identity)
        in_specs.append(pl.BlockSpec((None, Hb, W, idc), row_main))
        if id_mode == "expand":
            inputs.append(we)
            in_specs.append(pl.BlockSpec(we.shape, lambda n, i: (0, 0)))

    kernel = _make_band_conv_kernel(Hb, W, cin, cout, nb, slope, cdtype,
                                    in_act, id_mode, idc)

    out_shape = (jax.ShapeDtypeStruct((N, H, W, cout), store_dtype),
                 jax.ShapeDtypeStruct((N, nb, 2, cout), jnp.float32))
    out_specs = (pl.BlockSpec((None, Hb, W, cout), row_main),
                 pl.BlockSpec((None, None, 2, cout), lambda n, i: (n, i, 0, 0)))

    return pl.pallas_call(
        kernel,
        grid=(N, nb),
        in_specs=in_specs,
        out_specs=out_specs,
        out_shape=out_shape,
        scratch_shapes=[pltpu.VMEM((Hb + 2, W + 2, cin), cdtype)],
        compiler_params=pltpu.CompilerParams(
            dimension_semantics=("parallel", "parallel"),
            vmem_limit_bytes=vmem_limit),
    )(*inputs)


# ----------------------------------------------------------------------------
# finalize kernel: BN2 scale/shift + LeakyReLU, lane-dense output store
# ----------------------------------------------------------------------------
def _make_finalize_kernel(slope):
    def kernel(a_ref, sc_ref, sh_ref, o_ref):
        v = a_ref[...].astype(jnp.float32) * sc_ref[...] + sh_ref[...]
        o_ref[...] = jnp.where(v > 0, v, slope * v).astype(o_ref.dtype)
    return kernel


def _band_finalize(a, scale, shift, *, out_dtype, band_rows, slope, vmem_limit):
    N, H, W, C = a.shape
    Hb = band_rows
    nb = H // Hb
    row_main = lambda n, i: (n, i, 0, 0)
    return pl.pallas_call(
        _make_finalize_kernel(slope),
        grid=(N, nb),
        in_specs=[pl.BlockSpec((None, Hb, W, C), row_main),
                  pl.BlockSpec((1, C), lambda n, i: (0, 0)),
                  pl.BlockSpec((1, C), lambda n, i: (0, 0))],
        out_specs=pl.BlockSpec((None, Hb, W, C), row_main),
        out_shape=jax.ShapeDtypeStruct((N, H, W, C), out_dtype),
        compiler_params=pltpu.CompilerParams(
            dimension_semantics=("parallel", "parallel"),
            vmem_limit_bytes=vmem_limit),
    )(a, scale, shift)


# ----------------------------------------------------------------------------
# wrapper: 3 band-tiled passes (conv1+stats, conv2+identity+stats, finalize)
# ----------------------------------------------------------------------------
def residual_block_pallas(x_nhwc, params, *, eps=1e-5, slope=0.2,
                          compute_dtype=jnp.bfloat16, out_dtype=None,
                          band_rows=None):
    N, H, W, inc = x_nhwc.shape
    w1 = params["w1"]                       # (3, 3, inc,  midc)  HWIO
    w2 = params["w2"]                       # (3, 3, midc, outc)  HWIO
    midc, outc = w1.shape[-1], w2.shape[-1]
    has_expand = "we" in params
    if out_dtype is None:
        out_dtype = compute_dtype
    M = float(N * H * W)

    vmem_limit = _vmem_limit_bytes()
    if band_rows is None:
        cmax = max(inc, midc, outc)
        band_rows = _choose_band_rows(H, W, cmax, cmax,
                                      jnp.dtype(compute_dtype).itemsize,
                                      vmem_limit // 2)
    assert H % band_rows == 0, (H, band_rows)

    # bf16 (compute_dtype) activations/weights in HBM; f32 only for BN math.
    x_c = x_nhwc.astype(compute_dtype)
    w1_t = w1.reshape(9, inc, midc).astype(compute_dtype)
    w2_t = w2.reshape(9, midc, outc).astype(compute_dtype)
    we = params["we"].astype(compute_dtype) if has_expand else None

    def bn_affine(stats, gamma, beta):
        # reduce per-band partials, fold BatchNorm into one scale/shift pair.
        tot = jnp.sum(stats, axis=(0, 1))                  # (2, C) f32
        mean = tot[0] / M
        var = jnp.maximum(tot[1] / M - mean * mean, 0.0)   # biased variance
        scale = gamma.astype(jnp.float32) * jax.lax.rsqrt(var + eps)
        shift = beta.astype(jnp.float32) - mean * scale
        return scale.reshape(1, -1), shift.reshape(1, -1)

    # pass 1: conv1 (pre-BN output) + BN1 partial stats
    a1, st1 = _band_conv(x_c, w1_t, store_dtype=compute_dtype,
                         cdtype=compute_dtype, band_rows=band_rows,
                         slope=slope, vmem_limit=vmem_limit)
    sc1, sh1 = bn_affine(st1, params["g1"], params["b1"])

    # pass 2: BN1+LeakyReLU on the fly, conv2, + identity (add or fused 1x1)
    a2, st2 = _band_conv(a1, w2_t, scale_shift=(sc1, sh1),
                         identity=x_c, we=we,
                         store_dtype=compute_dtype, cdtype=compute_dtype,
                         band_rows=band_rows, slope=slope,
                         vmem_limit=vmem_limit)
    sc2, sh2 = bn_affine(st2, params["g2"], params["b2"])

    # pass 3: BN2 + LeakyReLU finalize
    return _band_finalize(a2, sc2, sh2, out_dtype=out_dtype,
                          band_rows=band_rows, slope=slope,
                          vmem_limit=vmem_limit)


# ----------------------------------------------------------------------------
# Pure-JAX reference (for correctness check)
# ----------------------------------------------------------------------------
def residual_block_ref(x_nhwc, params, *, eps=1e-5, slope=0.2):
    def conv(x, w, pad):
        return jax.lax.conv_general_dilated(
            x, w, (1, 1), [(pad, pad), (pad, pad)],
            dimension_numbers=("NHWC", "HWIO", "NHWC"))

    def bn(v, g, b):
        mean = v.mean(axis=(0, 1, 2), keepdims=True)
        var = ((v - mean) ** 2).mean(axis=(0, 1, 2), keepdims=True)
        return ((v - mean) * jax.lax.rsqrt(var + eps)
                * g.reshape(1, 1, 1, -1) + b.reshape(1, 1, 1, -1))

    def lrelu(v):
        return jnp.where(v > 0, v, slope * v)

    identity = (conv(x_nhwc, params["we"][None, None], 0)
                if "we" in params else x_nhwc)
    h = lrelu(bn(conv(x_nhwc, params["w1"], 1), params["g1"], params["b1"]))
    h = conv(h, params["w2"], 1)
    return lrelu(bn(h + identity, params["g2"], params["b2"]))


# ----------------------------------------------------------------------------
# Deterministic parameter init (synthetic; shapes from the module __init__)
# ----------------------------------------------------------------------------
def init_params(key, inc, outc, scale=1.0):
    midc = int(outc * scale)
    k = jax.random.split(key, 7)
    params = {
        "w1": jax.random.normal(k[0], (3, 3, inc, midc), jnp.float32)
              * (1.0 / (3 * 3 * inc) ** 0.5),
        "g1": 1.0 + 0.1 * jax.random.normal(k[1], (midc,), jnp.float32),
        "b1": 0.1 * jax.random.normal(k[2], (midc,), jnp.float32),
        "w2": jax.random.normal(k[3], (3, 3, midc, outc), jnp.float32)
              * (1.0 / (3 * 3 * midc) ** 0.5),
        "g2": 1.0 + 0.1 * jax.random.normal(k[4], (outc,), jnp.float32),
        "b2": 0.1 * jax.random.normal(k[5], (outc,), jnp.float32),
    }
    if inc != outc:  # conv_expand: 1x1, no bias
        params["we"] = (jax.random.normal(k[6], (inc, outc), jnp.float32)
                        * (1.0 / inc ** 0.5))
    return params


# ----------------------------------------------------------------------------
if __name__ == "__main__":
    key = jax.random.PRNGKey(0)
    N, H, W = 2, 16, 16

    # case 1: inc == outc (conv_expand is None), 2 row bands (halo exercised)
    # case 2: inc != outc (1x1 conv_expand fused in pass 2), 4 row bands
    for (inc, outc, br) in [(32, 32, 8), (16, 32, 4)]:
        kx, kp, key = jax.random.split(key, 3)
        x = jax.random.normal(kx, (N, H, W, inc), jnp.float32)   # NHWC
        params = init_params(kp, inc, outc, scale=1.0)

        ref = residual_block_ref(x, params)

        # f32 compute path: tight check of the tiled / two-phase-BN math.
        out32 = jax.block_until_ready(
            residual_block_pallas(x, params, compute_dtype=jnp.float32,
                                  band_rows=br))
        assert out32.shape == (N, H, W, outc)
        err32 = float(jnp.max(jnp.abs(out32.astype(jnp.float32) - ref)))
        assert err32 < 3e-3, f"f32 path mismatch: max abs err {err32}"

        # bf16 MXU path (bf16 activations/weights in HBM, f32 accumulation).
        outbf = jax.block_until_ready(
            residual_block_pallas(x, params, compute_dtype=jnp.bfloat16,
                                  band_rows=br))
        assert outbf.shape == (N, H, W, outc)
        errbf = float(jnp.max(jnp.abs(outbf.astype(jnp.float32) - ref)))
        assert errbf < 1e-1, f"bf16 path mismatch: max abs err {errbf}"

    print("KERNEL_OK")
</pallas_src>

<mosaic_0001>
module attributes {stable_mosaic.version = 11 : i64} {
  func.func @kernel(%arg0: i32, %arg1: i32, %arg2: memref<1x8x16x32xf32, #tpu.memory_space<vmem>>, %arg3: memref<1x1x16x32xf32, #tpu.memory_space<vmem>>, %arg4: memref<1x1x16x32xf32, #tpu.memory_space<vmem>>, %arg5: memref<9x32x32xf32, #tpu.memory_space<vmem>>, %arg6: memref<1x8x16x32xf32, #tpu.memory_space<vmem>>, %arg7: memref<1x1x2x32xf32, #tpu.memory_space<vmem>>, %arg8: memref<10x18x32xf32, #tpu.memory_space<vmem>>) attributes {dimension_semantics = [#tpu.dimension_semantics<parallel>, #tpu.dimension_semantics<parallel>], iteration_bounds = array<i64: 2, 2>, scalar_prefetch = 0 : i64, scratch_operands = 1 : i64, tpu.core_type = #tpu.core_type<tc>, window_params = [{transform_indices = @transform_0, window_bounds = array<i64: 1, 8, 16, 32>}, {transform_indices = @transform_1, window_bounds = array<i64: 1, 1, 16, 32>}, {transform_indices = @transform_2, window_bounds = array<i64: 1, 1, 16, 32>}, {pipeline_mode = #tpu.pipeline_mode<synchronous>, transform_indices = @transform_3, window_bounds = array<i64: 9, 32, 32>}, {transform_indices = @transform_4, window_bounds = array<i64: 1, 8, 16, 32>}, {transform_indices = @transform_5, window_bounds = array<i64: 1, 1, 2, 32>}]} {
    %cst = arith.constant 0.000000e+00 : f32
    %0 = vector.broadcast %cst : f32 to vector<10x18x32xf32>
    %c0 = arith.constant 0 : index
    %c0_0 = arith.constant 0 : index
    %c0_1 = arith.constant 0 : index
    %1 = vector.load %arg8[%c0, %c0_0, %c0_1] : memref<10x18x32xf32, #tpu.memory_space<vmem>>, vector<10x18x32xf32>
    tpu.vector_store %arg8[%c0, %c0_0, %c0_1], %0 {strides = array<i32>} : memref<10x18x32xf32, #tpu.memory_space<vmem>>, vector<10x18x32xf32>,
    %c0_2 = arith.constant 0 : index
    %c0_3 = arith.constant 0 : index
    %c0_4 = arith.constant 0 : index
    %c0_5 = arith.constant 0 : index
    %2 = vector.load %arg2[%c0_2, %c0_3, %c0_4, %c0_5] : memref<1x8x16x32xf32, #tpu.memory_space<vmem>>, vector<1x8x16x32xf32>
    %3 = vector.shape_cast %2 : vector<1x8x16x32xf32> to vector<8x16x32xf32>
    %c1 = arith.constant 1 : index
    %c1_6 = arith.constant 1 : index
    %c0_7 = arith.constant 0 : index
    %4 = vector.load %arg8[%c1, %c1_6, %c0_7] : memref<10x18x32xf32, #tpu.memory_space<vmem>>, vector<8x16x32xf32>
    tpu.vector_store %arg8[%c1, %c1_6, %c0_7], %3 {strides = array<i32>} : memref<10x18x32xf32, #tpu.memory_space<vmem>>, vector<8x16x32xf32>,
    %c0_i32 = arith.constant 0 : i32
    %5 = arith.cmpi sgt, %arg1, %c0_i32 : i32
    %6 = arith.extui %5 : i1 to i32
    %c0_i32_8 = arith.constant 0 : i32
    %7 = arith.cmpi ne, %6, %c0_i32_8 : i32
    scf.if %7 {
      %c0_81 = arith.constant 0 : index
      %c0_82 = arith.constant 0 : index
      %c0_83 = arith.constant 0 : index
      %c0_84 = arith.constant 0 : index
      %81 = vector.load %arg3[%c0_81, %c0_82, %c0_83, %c0_84] : memref<1x1x16x32xf32, #tpu.memory_space<vmem>>, vector<1x1x16x32xf32>
      %82 = vector.shape_cast %81 : vector<1x1x16x32xf32> to vector<16x32xf32>
      %83 = vector.shape_cast %82 : vector<16x32xf32> to vector<1x16x32xf32>
      %c0_85 = arith.constant 0 : index
      %c1_86 = arith.constant 1 : index
      %c0_87 = arith.constant 0 : index
      %84 = vector.load %arg8[%c0_85, %c1_86, %c0_87] : memref<10x18x32xf32, #tpu.memory_space<vmem>>, vector<1x16x32xf32>
      tpu.vector_store %arg8[%c0_85, %c1_86, %c0_87], %83 {strides = array<i32>} : memref<10x18x32xf32, #tpu.memory_space<vmem>>, vector<1x16x32xf32>,
    } else {
    }
    %c1_i32 = arith.constant 1 : i32
    %8 = arith.cmpi slt, %arg1, %c1_i32 : i32
    %9 = arith.extui %8 : i1 to i32
    %c0_i32_9 = arith.constant 0 : i32
    %10 = arith.cmpi ne, %9, %c0_i32_9 : i32
    scf.if %10 {
      %c0_81 = arith.constant 0 : index
      %c0_82 = arith.constant 0 : index
      %c0_83 = arith.constant 0 : index
      %c0_84 = arith.constant 0 : index
      %81 = vector.load %arg4[%c0_81, %c0_82, %c0_83, %c0_84] : memref<1x1x16x32xf32, #tpu.memory_space<vmem>>, vector<1x1x16x32xf32>
      %82 = vector.shape_cast %81 : vector<1x1x16x32xf32> to vector<16x32xf32>
      %83 = vector.shape_cast %82 : vector<16x32xf32> to vector<1x16x32xf32>
      %c9 = arith.constant 9 : index
      %c1_85 = arith.constant 1 : index
      %c0_86 = arith.constant 0 : index
      %84 = vector.load %arg8[%c9, %c1_85, %c0_86] : memref<10x18x32xf32, #tpu.memory_space<vmem>>, vector<1x16x32xf32>
      tpu.vector_store %arg8[%c9, %c1_85, %c0_86], %83 {strides = array<i32>} : memref<10x18x32xf32, #tpu.memory_space<vmem>>, vector<1x16x32xf32>,
    } else {
    }
    %cst_10 = arith.constant 0.000000e+00 : f32
    %11 = vector.broadcast %cst_10 : f32 to vector<128x32xf32>
    %c0_11 = arith.constant 0 : index
    %c0_12 = arith.constant 0 : index
    %c0_13 = arith.constant 0 : index
    %12 = vector.load %arg8[%c0_11, %c0_12, %c0_13] : memref<10x18x32xf32, #tpu.memory_space<vmem>>, vector<8x16x32xf32>
    %13 = vector.shape_cast %12 : vector<8x16x32xf32> to vector<128x32xf32>
    %c0_14 = arith.constant 0 : index
    %c0_15 = arith.constant 0 : index
    %c0_16 = arith.constant 0 : index
    %14 = vector.load %arg5[%c0_14, %c0_15, %c0_16] : memref<9x32x32xf32, #tpu.memory_space<vmem>>, vector<1x32x32xf32>
    %15 = vector.shape_cast %14 : vector<1x32x32xf32> to vector<32x32xf32>
    %cst_17 = arith.constant dense<0.000000e+00> : vector<128x32xf32>
    %16 = tpu.matmul %13, %15, %cst_17 {dimension_numbers = #tpu.dot_dimension_numbers<[1], [0], [0], [1], [0, 0, 1, 1], [], []>} : vector<128x32xf32>, vector<32x32xf32>, vector<128x32xf32> -> vector<128x32xf32>
    %17 = arith.addf %11, %16 : vector<128x32xf32>
    %c0_18 = arith.constant 0 : index
    %c1_19 = arith.constant 1 : index
    %c0_20 = arith.constant 0 : index
    %18 = vector.load %arg8[%c0_18, %c1_19, %c0_20] : memref<10x18x32xf32, #tpu.memory_space<vmem>>, vector<8x16x32xf32>
    %19 = vector.shape_cast %18 : vector<8x16x32xf32> to vector<128x32xf32>
    %c1_21 = arith.constant 1 : index
    %c0_22 = arith.constant 0 : index
    %c0_23 = arith.constant 0 : index
    %20 = vector.load %arg5[%c1_21, %c0_22, %c0_23] : memref<9x32x32xf32, #tpu.memory_space<vmem>>, vector<1x32x32xf32>
    %21 = vector.shape_cast %20 : vector<1x32x32xf32> to vector<32x32xf32>
    %cst_24 = arith.constant dense<0.000000e+00> : vector<128x32xf32>
    %22 = tpu.matmul %19, %21, %cst_24 {dimension_numbers = #tpu.dot_dimension_numbers<[1], [0], [0], [1], [0, 0, 1, 1], [], []>} : vector<128x32xf32>, vector<32x32xf32>, vector<128x32xf32> -> vector<128x32xf32>
    %23 = arith.addf %17, %22 : vector<128x32xf32>
    %c0_25 = arith.constant 0 : index
    %c2 = arith.constant 2 : index
    %c0_26 = arith.constant 0 : index
    %24 = vector.load %arg8[%c0_25, %c2, %c0_26] : memref<10x18x32xf32, #tpu.memory_space<vmem>>, vector<8x16x32xf32>
    %25 = vector.shape_cast %24 : vector<8x16x32xf32> to vector<128x32xf32>
    %c2_27 = arith.constant 2 : index
    %c0_28 = arith.constant 0 : index
    %c0_29 = arith.constant 0 : index
    %26 = vector.load %arg5[%c2_27, %c0_28, %c0_29] : memref<9x32x32xf32, #tpu.memory_space<vmem>>, vector<1x32x32xf32>
    %27 = vector.shape_cast %26 : vector<1x32x32xf32> to vector<32x32xf32>
    %cst_30 = arith.constant dense<0.000000e+00> : vector<128x32xf32>
    %28 = tpu.matmul %25, %27, %cst_30 {dimension_numbers = #tpu.dot_dimension_numbers<[1], [0], [0], [1], [0, 0, 1, 1], [], []>} : vector<128x32xf32>, vector<32x32xf32>, vector<128x32xf32> -> vector<128x32xf32>
    %29 = arith.addf %23, %28 : vector<128x32xf32>
    %c1_31 = arith.constant 1 : index
    %c0_32 = arith.constant 0 : index
    %c0_33 = arith.constant 0 : index
    %30 = vector.load %arg8[%c1_31, %c0_32, %c0_33] : memref<10x18x32xf32, #tpu.memory_space<vmem>>, vector<8x16x32xf32>
    %31 = vector.shape_cast %30 : vector<8x16x32xf32> to vector<128x32xf32>
    %c3 = arith.constant 3 : index
    %c0_34 = arith.constant 0 : index
    %c0_35 = arith.constant 0 : index
    %32 = vector.load %arg5[%c3, %c0_34, %c0_35] : memref<9x32x32xf32, #tpu.memory_space<vmem>>, vector<1x32x32xf32>
    %33 = vector.shape_cast %32 : vector<1x32x32xf32> to vector<32x32xf32>
    %cst_36 = arith.constant dense<0.000000e+00> : vector<128x32xf32>
    %34 = tpu.matmul %31, %33, %cst_36 {dimension_numbers = #tpu.dot_dimension_numbers<[1], [0], [0], [1], [0, 0, 1, 1], [], []>} : vector<128x32xf32>, vector<32x32xf32>, vector<128x32xf32> -> vector<128x32xf32>
    %35 = arith.addf %29, %34 : vector<128x32xf32>
    %c1_37 = arith.constant 1 : index
    %c1_38 = arith.constant 1 : index
    %c0_39 = arith.constant 0 : index
    %36 = vector.load %arg8[%c1_37, %c1_38, %c0_39] : memref<10x18x32xf32, #tpu.memory_space<vmem>>, vector<8x16x32xf32>
    %37 = vector.shape_cast %36 : vector<8x16x32xf32> to vector<128x32xf32>
    %c4 = arith.constant 4 : index
    %c0_40 = arith.constant 0 : index
    %c0_41 = arith.constant 0 : index
    %38 = vector.load %arg5[%c4, %c0_40, %c0_41] : memref<9x32x32xf32, #tpu.memory_space<vmem>>, vector<1x32x32xf32>
    %39 = vector.shape_cast %38 : vector<1x32x32xf32> to vector<32x32xf32>
    %cst_42 = arith.constant dense<0.000000e+00> : vector<128x32xf32>
    %40 = tpu.matmul %37, %39, %cst_42 {dimension_numbers = #tpu.dot_dimension_numbers<[1], [0], [0], [1], [0, 0, 1, 1], [], []>} : vector<128x32xf32>, vector<32x32xf32>, vector<128x32xf32> -> vector<128x32xf32>
    %41 = arith.addf %35, %40 : vector<128x32xf32>
    %c1_43 = arith.constant 1 : index
    %c2_44 = arith.constant 2 : index
    %c0_45 = arith.constant 0 : index
    %42 = vector.load %arg8[%c1_43, %c2_44, %c0_45] : memref<10x18x32xf32, #tpu.memory_space<vmem>>, vector<8x16x32xf32>
    %43 = vector.shape_cast %42 : vector<8x16x32xf32> to vector<128x32xf32>
    %c5 = arith.constant 5 : index
    %c0_46 = arith.constant 0 : index
    %c0_47 = arith.constant 0 : index
    %44 = vector.load %arg5[%c5, %c0_46, %c0_47] : memref<9x32x32xf32, #tpu.memory_space<vmem>>, vector<1x32x32xf32>
    %45 = vector.shape_cast %44 : vector<1x32x32xf32> to vector<32x32xf32>
    %cst_48 = arith.constant dense<0.000000e+00> : vector<128x32xf32>
    %46 = tpu.matmul %43, %45, %cst_48 {dimension_numbers = #tpu.dot_dimension_numbers<[1], [0], [0], [1], [0, 0, 1, 1], [], []>} : vector<128x32xf32>, vector<32x32xf32>, vector<128x32xf32> -> vector<128x32xf32>
    %47 = arith.addf %41, %46 : vector<128x32xf32>
    %c2_49 = arith.constant 2 : index
    %c0_50 = arith.constant 0 : index
    %c0_51 = arith.constant 0 : index
    %48 = vector.load %arg8[%c2_49, %c0_50, %c0_51] : memref<10x18x32xf32, #tpu.memory_space<vmem>>, vector<8x16x32xf32>
    %49 = vector.shape_cast %48 : vector<8x16x32xf32> to vector<128x32xf32>
    %c6 = arith.constant 6 : index
    %c0_52 = arith.constant 0 : index
    %c0_53 = arith.constant 0 : index
    %50 = vector.load %arg5[%c6, %c0_52, %c0_53] : memref<9x32x32xf32, #tpu.memory_space<vmem>>, vector<1x32x32xf32>
    %51 = vector.shape_cast %50 : vector<1x32x32xf32> to vector<32x32xf32>
    %cst_54 = arith.constant dense<0.000000e+00> : vector<128x32xf32>
    %52 = tpu.matmul %49, %51, %cst_54 {dimension_numbers = #tpu.dot_dimension_numbers<[1], [0], [0], [1], [0, 0, 1, 1], [], []>} : vector<128x32xf32>, vector<32x32xf32>, vector<128x32xf32> -> vector<128x32xf32>
    %53 = arith.addf %47, %52 : vector<128x32xf32>
    %c2_55 = arith.constant 2 : index
    %c1_56 = arith.constant 1 : index
    %c0_57 = arith.constant 0 : index
    %54 = vector.load %arg8[%c2_55, %c1_56, %c0_57] : memref<10x18x32xf32, #tpu.memory_space<vmem>>, vector<8x16x32xf32>
    %55 = vector.shape_cast %54 : vector<8x16x32xf32> to vector<128x32xf32>
    %c7 = arith.constant 7 : index
    %c0_58 = arith.constant 0 : index
    %c0_59 = arith.constant 0 : index
    %56 = vector.load %arg5[%c7, %c0_58, %c0_59] : memref<9x32x32xf32, #tpu.memory_space<vmem>>, vector<1x32x32xf32>
    %57 = vector.shape_cast %56 : vector<1x32x32xf32> to vector<32x32xf32>
    %cst_60 = arith.constant dense<0.000000e+00> : vector<128x32xf32>
    %58 = tpu.matmul %55, %57, %cst_60 {dimension_numbers = #tpu.dot_dimension_numbers<[1], [0], [0], [1], [0, 0, 1, 1], [], []>} : vector<128x32xf32>, vector<32x32xf32>, vector<128x32xf32> -> vector<128x32xf32>
    %59 = arith.addf %53, %58 : vector<128x32xf32>
    %c2_61 = arith.constant 2 : index
    %c2_62 = arith.constant 2 : index
    %c0_63 = arith.constant 0 : index
    %60 = vector.load %arg8[%c2_61, %c2_62, %c0_63] : memref<10x18x32xf32, #tpu.memory_space<vmem>>, vector<8x16x32xf32>
    %61 = vector.shape_cast %60 : vector<8x16x32xf32> to vector<128x32xf32>
    %c8 = arith.constant 8 : index
    %c0_64 = arith.constant 0 : index
    %c0_65 = arith.constant 0 : index
    %62 = vector.load %arg5[%c8, %c0_64, %c0_65] : memref<9x32x32xf32, #tpu.memory_space<vmem>>, vector<1x32x32xf32>
    %63 = vector.shape_cast %62 : vector<1x32x32xf32> to vector<32x32xf32>
    %cst_66 = arith.constant dense<0.000000e+00> : vector<128x32xf32>
    %64 = tpu.matmul %61, %63, %cst_66 {dimension_numbers = #tpu.dot_dimension_numbers<[1], [0], [0], [1], [0, 0, 1, 1], [], []>} : vector<128x32xf32>, vector<32x32xf32>, vector<128x32xf32> -> vector<128x32xf32>
    %65 = arith.addf %59, %64 : vector<128x32xf32>
    %cst_67 = arith.constant dense<0.000000e+00> : vector<32xf32>
    %66 = vector.multi_reduction <add>, %65, %cst_67 [0] : vector<128x32xf32> to vector<32xf32>
    %67 = vector.shape_cast %66 : vector<32xf32> to vector<1x32xf32>
    %c0_68 = arith.constant 0 : index
    %c0_69 = arith.constant 0 : index
    %c0_70 = arith.constant 0 : index
    %c0_71 = arith.constant 0 : index
    %68 = vector.load %arg7[%c0_68, %c0_69, %c0_70, %c0_71] : memref<1x1x2x32xf32, #tpu.memory_space<vmem>>, vector<1x1x1x32xf32>
    %69 = vector.shape_cast %68 : vector<1x1x1x32xf32> to vector<1x32xf32>
    %70 = vector.shape_cast %67 : vector<1x32xf32> to vector<1x1x1x32xf32>
    tpu.vector_store %arg7[%c0_68, %c0_69, %c0_70, %c0_71], %70 {strides = array<i32>} : memref<1x1x2x32xf32, #tpu.memory_space<vmem>>, vector<1x1x1x32xf32>,
    %71 = arith.mulf %65, %65 : vector<128x32xf32>
    %cst_72 = arith.constant dense<0.000000e+00> : vector<32xf32>
    %72 = vector.multi_reduction <add>, %71, %cst_72 [0] : vector<128x32xf32> to vector<32xf32>
    %73 = vector.shape_cast %72 : vector<32xf32> to vector<1x32xf32>
    %c0_73 = arith.constant 0 : index
    %c0_74 = arith.constant 0 : index
    %c1_75 = arith.constant 1 : index
    %c0_76 = arith.constant 0 : index
    %74 = vector.load %arg7[%c0_73, %c0_74, %c1_75, %c0_76] : memref<1x1x2x32xf32, #tpu.memory_space<vmem>>, vector<1x1x1x32xf32>
    %75 = vector.shape_cast %74 : vector<1x1x1x32xf32> to vector<1x32xf32>
    %76 = vector.shape_cast %73 : vector<1x32xf32> to vector<1x1x1x32xf32>
    tpu.vector_store %arg7[%c0_73, %c0_74, %c1_75, %c0_76], %76 {strides = array<i32>} : memref<1x1x2x32xf32, #tpu.memory_space<vmem>>, vector<1x1x1x32xf32>,
    %77 = vector.shape_cast %65 : vector<128x32xf32> to vector<8x16x32xf32>
    %c0_77 = arith.constant 0 : index
    %c0_78 = arith.constant 0 : index
    %c0_79 = arith.constant 0 : index
    %c0_80 = arith.constant 0 : index
    %78 = vector.load %arg6[%c0_77, %c0_78, %c0_79, %c0_80] : memref<1x8x16x32xf32, #tpu.memory_space<vmem>>, vector<1x8x16x32xf32>
    %79 = vector.shape_cast %78 : vector<1x8x16x32xf32> to vector<8x16x32xf32>
    %80 = vector.shape_cast %77 : vector<8x16x32xf32> to vector<1x8x16x32xf32>
    tpu.vector_store %arg6[%c0_77, %c0_78, %c0_79, %c0_80], %80 {strides = array<i32>} : memref<1x8x16x32xf32, #tpu.memory_space<vmem>>, vector<1x8x16x32xf32>,
    return
  }
  func.func @transform_0(%arg0: i32, %arg1: i32) -> (i32, i32, i32, i32) {
    %c0_i32 = arith.constant 0 : i32
    %c0_i32_0 = arith.constant 0 : i32
    %c0_i32_1 = arith.constant 0 : i32
    return %arg0, %arg1, %c0_i32, %c0_i32_0 : i32, i32, i32, i32
  }
  func.func @transform_1(%arg0: i32, %arg1: i32) -> (i32, i32, i32, i32) {
    %c8_i32 = arith.constant 8 : i32
    %0 = arith.muli %arg1, %c8_i32 : i32
    %c1_i32 = arith.constant 1 : i32
    %1 = arith.subi %0, %c1_i32 : i32
    %c0_i32 = arith.constant 0 : i32
    %2 = arith.maxsi %1, %c0_i32 : i32
    %c0_i32_0 = arith.constant 0 : i32
    %c0_i32_1 = arith.constant 0 : i32
    %c0_i32_2 = arith.constant 0 : i32
    return %arg0, %2, %c0_i32_0, %c0_i32_1 : i32, i32, i32, i32
  }
  func.func @transform_2(%arg0: i32, %arg1: i32) -> (i32, i32, i32, i32) {
    %c1_i32 = arith.constant 1 : i32
    %0 = arith.addi %arg1, %c1_i32 : i32
    %c8_i32 = arith.constant 8 : i32
    %1 = arith.muli %0, %c8_i32 : i32
    %c15_i32 = arith.constant 15 : i32
    %2 = arith.minsi %1, %c15_i32 : i32
    %c0_i32 = arith.constant 0 : i32
    %c0_i32_0 = arith.constant 0 : i32
    %c0_i32_1 = arith.constant 0 : i32
    return %arg0, %2, %c0_i32, %c0_i32_0 : i32, i32, i32, i32
  }
  func.func @transform_3(%arg0: i32, %arg1: i32) -> (i32, i32, i32) {
    %c0_i32 = arith.constant 0 : i32
    %c0_i32_0 = arith.constant 0 : i32
    %c0_i32_1 = arith.constant 0 : i32
    %c0_i32_2 = arith.constant 0 : i32
    return %c0_i32, %c0_i32_0, %c0_i32_1 : i32, i32, i32
  }
  func.func @transform_4(%arg0: i32, %arg1: i32) -> (i32, i32, i32, i32) {
    %c0_i32 = arith.constant 0 : i32
    %c0_i32_0 = arith.constant 0 : i32
    %c0_i32_1 = arith.constant 0 : i32
    return %arg0, %arg1, %c0_i32, %c0_i32_0 : i32, i32, i32, i32
  }
  func.func @transform_5(%arg0: i32, %arg1: i32) -> (i32, i32, i32, i32) {
    %c0_i32 = arith.constant 0 : i32
    %c0_i32_0 = arith.constant 0 : i32
    %c0_i32_1 = arith.constant 0 : i32
    return %arg0, %arg1, %c0_i32, %c0_i32_0 : i32, i32, i32, i32
  }
}

</mosaic_0001>

<llo_original>
// kernel: tpu_custom_call.1
$region0: #{tpu_custom_call.1}
  #allocation0 [shape = 'u32[]', space=smem, size = 0x4, offset = 0x4, fixed_abs, tag = 'smem constant byte address 0x4 - core index']
  #allocation1 [shape = 'u32[72,128]{1,0:T(1,128)}', space=vmem, size = 0x9000, scoped, tag = 'internal scratch']
  #allocation2 [shape = 'f32[10,18,32]{2,1,0:T(8,128)}', space=vmem, size = 0x1e000, scoped, tag = 'scratch operand']
  %s0 = inlined_call_operand.hbm [shape: f32[2,16,16,32], index: 0, kind: input, shape index: {}]
  %s1 = inlined_call_operand.hbm [shape: f32[2,16,16,32], index: 1, kind: input, shape index: {}]
  %s2 = inlined_call_operand.hbm [shape: f32[2,16,16,32], index: 2, kind: input, shape index: {}]
  %s3 = inlined_call_operand.hbm [shape: f32[9,32,32], index: 3, kind: input, shape index: {}]
  %s4 = inlined_call_operand.hbm [shape: f32[2,16,16,32], index: 4, kind: output, shape index: {0}]
  %s5 = inlined_call_operand.hbm [shape: f32[2,2,2,32], index: 5, kind: output, shape index: {1}]
  %6 = xla_tuple %s4, %s5
  %s7 = sld [smem:[#allocation0]]
  $region81: #{tpu_custom_call.1} parent=0
    _
  %s9 = ssub.s32 1, %s7
  %s10 = scalar_select 0, %s9, %s7
  $region1: #{tpu_custom_call.1} parent=0
    #allocation3 [shape = 'u8[131072]{0}', space=vmem, size = 0x20000, scoped, tag = 'input window, operand 0']
    #allocation4 [shape = 's32[2]{0}', space=sflag, size = 0x8, scoped, tag = 'scoped memory for tpu_custom_call.1']
    #allocation5 [shape = 's32[2]{0}', space=sflag, size = 0x8, scoped, tag = 'scoped memory for tpu_custom_call.1']
    #allocation6 [shape = 'u8[16384]{0}', space=vmem, size = 0x4000, scoped, tag = 'input window, operand 1']
    #allocation7 [shape = 's32[2]{0}', space=sflag, size = 0x8, scoped, tag = 'scoped memory for tpu_custom_call.1']
    #allocation8 [shape = 'u8[16384]{0}', space=vmem, size = 0x4000, scoped, tag = 'input window, operand 2']
    #allocation9 [shape = 'u8[147456]{0}', space=vmem, size = 0x24000, scoped, tag = 'input window, operand 3, single buffered']
    #allocation10 [shape = 's32[1]{0}', space=sflag, size = 0x4, scoped, tag = 'scoped memory for tpu_custom_call.1']
    #allocation11 [shape = 'u8[131072]{0}', space=vmem, size = 0x20000, scoped, tag = 'output window, operand 0']
    #allocation12 [shape = 'u8[2048]{0}', space=vmem, size = 0x800, scoped, tag = 'output window, operand 1']
    #allocation13 [shape = 's32[2]{0}', space=sflag, size = 0x8, scoped, tag = 'scoped memory for tpu_custom_call.1']
    %11 = vsyncpa [#allocation4], 0
    %s12 = scalar_lea.sflag [#allocation4], 1
    %13 = vsyncpa %s12, 0
    %14 = vsyncpa [#allocation7], 0
    %s15 = scalar_lea.sflag [#allocation7], 1
    %16 = vsyncpa %s15, 0
    %17 = vsyncpa [#allocation10], 0
    %18 = vsyncpa [#allocation5], 0
    %s19 = scalar_lea.sflag [#allocation5], 1
    %20 = vsyncpa %s19, 0
    %21 = vsyncpa [#allocation13], 0
    %s22 = scalar_lea.sflag [#allocation13], 1
    %23 = vsyncpa %s22, 0
    loop: start=0, step=1, limit=6
    $region2: #{tpu_custom_call.1} parent=1 // loop_pre_header
      _
    $region3: #{tpu_custom_call.1} parent=1 // loop_header
      %s25 = sphi 0, %s29
      %p26 = scmp.ge.s32.totalorder %s25, 6
      %s32 = sphi 0, %s44
      %s33 = sphi 0, %s40
      %s34 = sphi 0, %s32
      %s35 = sphi 0, %s33
      %s36 = sphi 0, %s34
      %s37 = sphi 0, %s35
      %s49 = sphi 0, %s51
      %s52 = sphi 0, %s49
      %s53 = sphi 0, %s52
      %s69 = sphi 0, %s53
      %s85 = sphi 0, %s87
      %s88 = sphi 0, %s85
      %s89 = sphi 0, %s88
      %s105 = sphi 0, %s89
      %s121 = sphi 0, %s123
      %s124 = sphi 0, %s121
      %s125 = sphi 0, %s124
      %s141 = sphi 0, %s125
      %s145 = sphi 0, %s145
      %s147 = sphi 0, %s145
      %s148 = sphi 0, %s147
      %s162 = sphi 0, %s148
      %s170 = sphi 0, %s172
      %s173 = sphi 0, %s170
      %s174 = sphi 0, %s173
      %s190 = sphi 0, %s174
      %s198 = sphi 0, %s200
      %s201 = sphi 0, %s198
      %s202 = sphi 0, %s201
      %s218 = sphi 0, %s202
    $region4: #{tpu_custom_call.1} parent=1 // loop_header_branch
      %28 = sbr.rel (%p26) target = $region8
    $region5: #{tpu_custom_call.1} parent=1 // loop_body
      %s30 = ssub.s32 %s25, 1
      %s31 = ssub.s32 %s25, 2
      %s38 = sadd.s32 1, %s33
      %p39 = scmp.ge.s32.totalorder %s38, 2
      %s40 = scalar_select %p39, 0, %s38
      %s41 = sadd.s32 1, %s32
      %s42 = scalar_select %p39, %s41, %s32
      %p43 = scmp.ge.s32.totalorder %s42, 2
      %s44 = scalar_select %p43, 0, %s42
      %s45 = ssub.s32 %s32, %s44
      %s46 = ssub.s32 %s33, %s40
      %s47 = sor.u32 %s45, %s46
      %p48 = scmp.eq.s32.totalorder %s47, 0
      %s50 = sadd.s32 %s49, 1
      %s51 = scalar_select %p48, %s49, %s50
      %p54 = pneg %p48
      %p55 = scmp.eq.s32.totalorder %s25, 3
      %p56 = por %p54, %p55
      %p57 = scmp.ne.s32.totalorder %s49, %s52
      %p58 = scmp.eq.s32.totalorder %s25, 0
      %p59 = por %p57, %p58
      %p60 = scmp.ne.s32.totalorder %s49, %s52
      %p61 = scmp.eq.s32.totalorder %s30, 3
      %p62 = por %p60, %p61
      %p63 = scmp.ne.s32.totalorder %s52, %s53
      %p64 = scmp.eq.s32.totalorder %s30, 0
      %p65 = por %p63, %p64
      %p66 = scmp.ne.s32.totalorder %s52, %s53
      %p67 = scmp.eq.s32.totalorder %s31, 3
      %p68 = por %p66, %p67
      %p70 = scmp.ne.s32.totalorder %s53, %s69
      %p71 = scmp.eq.s32.totalorder %s31, 0
      %p72 = por %p70, %p71
      %s73 = smul.u32 %s33, 8
      %s74 = ssub.s32 %s73, 1
      %p75 = scmp.gt.s32.totalorder %s74, 0
      %s76 = scalar_select %p75, %s74, 0
      %s77 = smul.u32 %s40, 8
      %s78 = ssub.s32 %s77, 1
      %p79 = scmp.gt.s32.totalorder %s78, 0
      %s80 = scalar_select %p79, %s78, 0
      %s81 = ssub.s32 %s32, %s44
      %s82 = ssub.s32 %s76, %s80
      %s83 = sor.u32 %s81, %s82
      %p84 = scmp.eq.s32.totalorder %s83, 0
      %s86 = sadd.s32 %s85, 1
      %s87 = scalar_select %p84, %s85, %s86
      %p90 = pneg %p84
      %p91 = scmp.eq.s32.totalorder %s25, 3
      %p92 = por %p90, %p91
      %p93 = scmp.ne.s32.totalorder %s85, %s88
      %p94 = scmp.eq.s32.totalorder %s25, 0
      %p95 = por %p93, %p94
      %p96 = scmp.ne.s32.totalorder %s85, %s88
      %p97 = scmp.eq.s32.totalorder %s30, 3
      %p98 = por %p96, %p97
      %p99 = scmp.ne.s32.totalorder %s88, %s89
      %p100 = scmp.eq.s32.totalorder %s30, 0
      %p101 = por %p99, %p100
      %p102 = scmp.ne.s32.totalorder %s88, %s89
      %p103 = scmp.eq.s32.totalorder %s31, 3
      %p104 = por %p102, %p103
      %p106 = scmp.ne.s32.totalorder %s89, %s105
      %p107 = scmp.eq.s32.totalorder %s31, 0
      %p108 = por %p106, %p107
      %s109 = sadd.s32 %s33, 1
      %s110 = smul.u32 %s109, 8
      %p111 = scmp.lt.s32.totalorder %s110, 15
      %s112 = scalar_select %p111, %s110, 15
      %s113 = sadd.s32 %s40, 1
      %s114 = smul.u32 %s113, 8
      %p115 = scmp.lt.s32.totalorder %s114, 15
      %s116 = scalar_select %p115, %s114, 15
      %s117 = ssub.s32 %s32, %s44
      %s118 = ssub.s32 %s112, %s116
      %s119 = sor.u32 %s117, %s118
      %p120 = scmp.eq.s32.totalorder %s119, 0
      %s122 = sadd.s32 %s121, 1
      %s123 = scalar_select %p120, %s121, %s122
      %p126 = pneg %p120
      %p127 = scmp.eq.s32.totalorder %s25, 3
      %p128 = por %p126, %p127
      %p129 = scmp.ne.s32.totalorder %s121, %s124
      %p130 = scmp.eq.s32.totalorder %s25, 0
      %p131 = por %p129, %p130
      %p132 = scmp.ne.s32.totalorder %s121, %s124
      %p133 = scmp.eq.s32.totalorder %s30, 3
      %p134 = por %p132, %p133
      %p135 = scmp.ne.s32.totalorder %s124, %s125
      %p136 = scmp.eq.s32.totalorder %s30, 0
      %p137 = por %p135, %p136
      %p138 = scmp.ne.s32.totalorder %s124, %s125
      %p139 = scmp.eq.s32.totalorder %s31, 3
      %p140 = por %p138, %p139
      %p142 = scmp.ne.s32.totalorder %s125, %s141
      %p143 = scmp.eq.s32.totalorder %s31, 0
      %p144 = por %p142, %p143
      %s146 = sadd.s32 %s145, 1
      %p149 = scmp.eq.s32.totalorder %s25, 3
      %p150 = scmp.ne.s32.totalorder %s145, %s147
      %p151 = scmp.eq.s32.totalorder %s25, 0
      %p152 = por %p150, %p151
      %p153 = scmp.ne.s32.totalorder %s145, %s147
      %p154 = scmp.eq.s32.totalorder %s30, 3
      %p155 = por %p153, %p154
      %p156 = scmp.ne.s32.totalorder %s147, %s148
      %p157 = scmp.eq.s32.totalorder %s30, 0
      %p158 = por %p156, %p157
      %p159 = scmp.ne.s32.totalorder %s147, %s148
      %p160 = scmp.eq.s32.totalorder %s31, 3
      %p161 = por %p159, %p160
      %p163 = scmp.ne.s32.totalorder %s148, %s162
      %p164 = scmp.eq.s32.totalorder %s31, 0
      %p165 = por %p163, %p164
      %s166 = ssub.s32 %s32, %s44
      %s167 = ssub.s32 %s33, %s40
      %s168 = sor.u32 %s166, %s167
      %p169 = scmp.eq.s32.totalorder %s168, 0
      %s171 = sadd.s32 %s170, 1
      %s172 = scalar_select %p169, %s170, %s171
      %p175 = pneg %p169
      %p176 = scmp.eq.s32.totalorder %s25, 3
      %p177 = por %p175, %p176
      %p178 = scmp.ne.s32.totalorder %s170, %s173
      %p179 = scmp.eq.s32.totalorder %s25, 0
      %p180 = por %p178, %p179
      %p181 = scmp.ne.s32.totalorder %s170, %s173
      %p182 = scmp.eq.s32.totalorder %s30, 3
      %p183 = por %p181, %p182
      %p184 = scmp.ne.s32.totalorder %s173, %s174
      %p185 = scmp.eq.s32.totalorder %s30, 0
      %p186 = por %p184, %p185
      %p187 = scmp.ne.s32.totalorder %s173, %s174
      %p188 = scmp.eq.s32.totalorder %s31, 3
      %p189 = por %p187, %p188
      %p191 = scmp.ne.s32.totalorder %s174, %s190
      %p192 = scmp.eq.s32.totalorder %s31, 0
      %p193 = por %p191, %p192
      %s194 = ssub.s32 %s32, %s44
      %s195 = ssub.s32 %s33, %s40
      %s196 = sor.u32 %s194, %s195
      %p197 = scmp.eq.s32.totalorder %s196, 0
      %s199 = sadd.s32 %s198, 1
      %s200 = scalar_select %p197, %s198, %s199
      %p203 = pneg %p197
      %p204 = scmp.eq.s32.totalorder %s25, 3
      %p205 = por %p203, %p204
      %p206 = scmp.ne.s32.totalorder %s198, %s201
      %p207 = scmp.eq.s32.totalorder %s25, 0
      %p208 = por %p206, %p207
      %p209 = scmp.ne.s32.totalorder %s198, %s201
      %p210 = scmp.eq.s32.totalorder %s30, 3
      %p211 = por %p209, %p210
      %p212 = scmp.ne.s32.totalorder %s201, %s202
      %p213 = scmp.eq.s32.totalorder %s30, 0
      %p214 = por %p212, %p213
      %p215 = scmp.ne.s32.totalorder %s201, %s202
      %p216 = scmp.eq.s32.totalorder %s31, 3
      %p217 = por %p215, %p216
      %p219 = scmp.ne.s32.totalorder %s202, %s218
      %p220 = scmp.eq.s32.totalorder %s31, 0
      %p221 = por %p219, %p220
      %p222 = scmp.le.s32.totalorder 1, %s25
      %p223 = scmp.lt.s32.totalorder %s25, 5
      %p224 = pnand %p222, %p223
      %p225 = pneg %p224
      // Predicated region
      $region9: #{tpu_custom_call.1} parent=5 // pred_check
        _
      $region10: #{tpu_custom_call.1} parent=5 // pred_check_branch
        %227 = sbr.rel (%p224) target = $region12
      $region11: #{tpu_custom_call.1} parent=5 // pred_region
        %s228 = ssub.s32 %s25, 1
        // Predicated region
        $region13: #{tpu_custom_call.1} parent=11 // pred_check
          %p229 = pneg %p158
        $region14: #{tpu_custom_call.1} parent=11 // pred_check_branch
          %231 = sbr.rel (%p229) target = $region16
        $region15: #{tpu_custom_call.1} parent=11 // pred_region
          %233 = vsyncadd [#allocation10], 0
          %s234 = sshll.u32 %s3, 4
          %s235 = int_to_ptr.hbm [resolvable:$true] %s234
          %s236 = sshll.u32 [#allocation9], 4
          %s237 = int_to_ptr.vmem [resolvable:$true] %s236
          %242 = dma.hbm_to_vmem [thread:$0]  %s235, 4608, %s237, [#allocation10], 128, 128, 8
        $region16: #{tpu_custom_call.1} parent=11 // pred_fallthru
          _
      $region12: #{tpu_custom_call.1} parent=5 // pred_fallthru
        _
      %p243 = scmp.lt.s32.totalorder %s25, 4
      // Predicated region
      $region17: #{tpu_custom_call.1} parent=5 // pred_check
        %p244 = pneg %p243
      $region18: #{tpu_custom_call.1} parent=5 // pred_check_branch
        %246 = sbr.rel (%p244) target = $region20
      $region19: #{tpu_custom_call.1} parent=5 // pred_region
        // Predicated region
        $region21: #{tpu_custom_call.1} parent=19 // pred_check
          %p247 = pneg %p59
        $region22: #{tpu_custom_call.1} parent=19 // pred_check_branch
          %249 = sbr.rel (%p247) target = $region24
        $region23: #{tpu_custom_call.1} parent=19 // pred_region
          %s250 = sand.u32 %s49, 1
          %s251 = scalar_lea.sflag [#allocation4], %s250
          %s252 = sand.u32 %s49, 1
          %s253 = smul.addr %s252, 128
          %s254 = scalar_lea.vmem [#allocation3], %s253
          %s255 = smul.u32 8, %s33
          %257 = vsyncadd %s251, 0
          %s258 = smul.addr %s255, 2
          %s259 = smul.addr %s32, 32
          %s260 = sadd.s32 %s258, %s259
          %s261 = smul.addr %s260, 8
          %s262 = scalar_lea.hbm %s0, %s261
          %s263 = sshll.u32 %s262, 4
          %s264 = int_to_ptr.hbm [resolvable:$true] %s263
          %s265 = sshll.u32 %s254, 4
          %s266 = int_to_ptr.vmem [resolvable:$true] %s265
          %271 = dma.hbm_to_vmem [thread:$0]  %s264, 2048, %s266, %s251, 128, 128, 8
        $region24: #{tpu_custom_call.1} parent=19 // pred_fallthru
          _
        // Predicated region
        $region25: #{tpu_custom_call.1} parent=19 // pred_check
          %p272 = pneg %p95
        $region26: #{tpu_custom_call.1} parent=19 // pred_check_branch
          %274 = sbr.rel (%p272) target = $region28
        $region27: #{tpu_custom_call.1} parent=19 // pred_region
          %s275 = sand.u32 %s25, 1
          %s276 = scalar_lea.sflag [#allocation7], %s275
          %s277 = sand.u32 %s85, 1
          %s278 = smul.addr %s277, 16
          %s279 = scalar_lea.vmem [#allocation6], %s278
          %s280 = smul.u32 %s33, 8
          %s281 = ssub.s32 %s280, 1
          %p282 = scmp.gt.s32.totalorder %s281, 0
          %s283 = scalar_select %p282, %s281, 0
          %285 = vsyncadd %s276, 0
          %s286 = smul.addr %s283, 2
          %s287 = smul.addr %s32, 32
          %s288 = sadd.s32 %s286, %s287
          %s289 = smul.addr %s288, 8
          %s290 = scalar_lea.hbm %s1, %s289
          %s291 = sshll.u32 %s290, 4
          %s292 = int_to_ptr.hbm [resolvable:$true] %s291
          %s293 = sshll.u32 %s279, 4
          %s294 = int_to_ptr.vmem [resolvable:$true] %s293
          %299 = dma.hbm_to_vmem [thread:$0]  %s292, 256, %s294, %s276, 128, 128, 8
        $region28: #{tpu_custom_call.1} parent=19 // pred_fallthru
          _
        // Predicated region
        $region29: #{tpu_custom_call.1} parent=19 // pred_check
          %p300 = pneg %p131
        $region30: #{tpu_custom_call.1} parent=19 // pred_check_branch
          %302 = sbr.rel (%p300) target = $region32
        $region31: #{tpu_custom_call.1} parent=19 // pred_region
          %s303 = sand.u32 %s25, 1
          %s304 = scalar_lea.sflag [#allocation7], %s303
          %s305 = sand.u32 %s121, 1
          %s306 = smul.addr %s305, 16
          %s307 = scalar_lea.vmem [#allocation8], %s306
          %s308 = sadd.s32 %s33, 1
          %s309 = smul.u32 %s308, 8
          %p310 = scmp.lt.s32.totalorder %s309, 15
          %s311 = scalar_select %p310, %s309, 15
          %313 = vsyncadd %s304, 0
          %s314 = smul.addr %s311, 2
          %s315 = smul.addr %s32, 32
          %s316 = sadd.s32 %s314, %s315
          %s317 = smul.addr %s316, 8
          %s318 = scalar_lea.hbm %s2, %s317
          %s319 = sshll.u32 %s318, 4
          %s320 = int_to_ptr.hbm [resolvable:$true] %s319
          %s321 = sshll.u32 %s307, 4
          %s322 = int_to_ptr.vmem [resolvable:$true] %s321
          %327 = dma.hbm_to_vmem [thread:$0]  %s320, 256, %s322, %s304, 128, 128, 8
        $region32: #{tpu_custom_call.1} parent=19 // pred_fallthru
          _
      $region20: #{tpu_custom_call.1} parent=5 // pred_fallthru
        _
      %p328 = scmp.le.s32.totalorder 1, %s25
      %p329 = scmp.lt.s32.totalorder %s25, 5
      %p330 = pnand %p328, %p329
      %p331 = pneg %p330
      // Predicated region
      $region33: #{tpu_custom_call.1} parent=5 // pred_check
        _
      $region34: #{tpu_custom_call.1} parent=5 // pred_check_branch
        %333 = sbr.rel (%p330) target = $region36
      $region35: #{tpu_custom_call.1} parent=5 // pred_region
        %s334 = ssub.s32 %s25, 1
        %s335 = sand.u32 %s52, 1
        %s336 = scalar_lea.sflag [#allocation4], %s335
        %s337 = sand.u32 %s52, 1
        %s338 = smul.addr %s337, 128
        %s339 = scalar_lea.vmem [#allocation3], %s338
        // Predicated region
        $region37: #{tpu_custom_call.1} parent=35 // pred_check
          %p340 = pneg %p65
        $region38: #{tpu_custom_call.1} parent=35 // pred_check_branch
          %342 = sbr.rel (%p340) target = $region40
        $region39: #{tpu_custom_call.1} parent=35 // pred_region
          %344 = dma.done %s336, 2048
        $region40: #{tpu_custom_call.1} parent=35 // pred_fallthru
          _
        %s345 = sand.u32 %s30, 1
        %s346 = scalar_lea.sflag [#allocation7], %s345
        %s347 = sand.u32 %s88, 1
        %s348 = smul.addr %s347, 16
        %s349 = scalar_lea.vmem [#allocation6], %s348
        // Predicated region
        $region41: #{tpu_custom_call.1} parent=35 // pred_check
          %p350 = pneg %p101
        $region42: #{tpu_custom_call.1} parent=35 // pred_check_branch
          %352 = sbr.rel (%p350) target = $region44
        $region43: #{tpu_custom_call.1} parent=35 // pred_region
          %354 = dma.done %s346, 256
        $region44: #{tpu_custom_call.1} parent=35 // pred_fallthru
          _
        %s355 = sand.u32 %s30, 1
        %s356 = scalar_lea.sflag [#allocation7], %s355
        %s357 = sand.u32 %s124, 1
        %s358 = smul.addr %s357, 16
        %s359 = scalar_lea.vmem [#allocation8], %s358
        // Predicated region
        $region45: #{tpu_custom_call.1} parent=35 // pred_check
          %p360 = pneg %p137
        $region46: #{tpu_custom_call.1} parent=35 // pred_check_branch
          %362 = sbr.rel (%p360) target = $region48
        $region47: #{tpu_custom_call.1} parent=35 // pred_region
          %364 = dma.done %s356, 256
        $region48: #{tpu_custom_call.1} parent=35 // pred_fallthru
          _
        // Predicated region
        $region49: #{tpu_custom_call.1} parent=35 // pred_check
          %p365 = pneg %p158
        $region50: #{tpu_custom_call.1} parent=35 // pred_check_branch
          %367 = sbr.rel (%p365) target = $region52
        $region51: #{tpu_custom_call.1} parent=35 // pred_region
          %369 = dma.done [#allocation10], 4608
        $region52: #{tpu_custom_call.1} parent=35 // pred_fallthru
          _
        %s370 = sand.u32 %s52, 1
        %s371 = scalar_lea.sflag [#allocation4], %s370
        %s372 = sand.u32 %s52, 1
        %s373 = smul.addr %s372, 128
        %s374 = scalar_lea.vmem [#allocation3], %s373
        %p375 = pneg %p65
        %p376 = pneg %p62
        %s377 = sand.u32 %s30, 1
        %s378 = scalar_lea.sflag [#allocation7], %s377
        %s379 = sand.u32 %s88, 1
        %s380 = smul.addr %s379, 16
        %s381 = scalar_lea.vmem [#allocation6], %s380
        %p382 = pneg %p101
        %p383 = pneg %p98
        %s384 = sand.u32 %s30, 1
        %s385 = scalar_lea.sflag [#allocation7], %s384
        %s386 = sand.u32 %s124, 1
        %s387 = smul.addr %s386, 16
        %s388 = scalar_lea.vmem [#allocation8], %s387
        %p389 = pneg %p137
        %p390 = pneg %p134
        %p391 = pneg %p158
        %p392 = pneg %p155
        %p393 = pneg %p186
        %p394 = pneg %p183
        %s395 = sand.u32 %s173, 1
        %s396 = scalar_lea.sflag [#allocation5], %s395
        %s397 = sand.u32 %s173, 1
        %s398 = smul.addr %s397, 128
        %s399 = scalar_lea.vmem [#allocation11], %s398
        %p400 = pneg %p214
        %p401 = pneg %p211
        %s402 = sand.u32 %s201, 1
        %s403 = scalar_lea.sflag [#allocation13], %s402
        %s404 = sand.u32 %s201, 1
        %s405 = smul.addr %s404, 2
        %s406 = scalar_lea.vmem [#allocation12], %s405
        %s407 = smul.u32 8, %s35
        %s408 = smul.u32 %s35, 8
        %s409 = ssub.s32 %s408, 1
        %p410 = scmp.gt.s32.totalorder %s409, 0
        %s411 = scalar_select %p410, %s409, 0
        %s412 = sadd.s32 %s35, 1
        %s413 = smul.u32 %s412, 8
        %p414 = scmp.lt.s32.totalorder %s413, 15
        %s415 = scalar_select %p414, %s413, 15
        %s416 = smul.u32 8, %s35
        %vm417 = vcmask 261120
        %418 = vst.msk [vmem:[#allocation2] sm:$0xff] %vm417, 0.0
        %419 = vst.msk [vmem:[#allocation2 + $0x8] sm:$0xff] %vm417, 0.0
        %vm420 = vcmask 254976
        %421 = vst.msk [vmem:[#allocation2 + $0x10] sm:$0x3] %vm420, 0.0
        %422 = vst.msk [vmem:[#allocation2 + $0x18] sm:$0xff] %vm417, 0.0
        %423 = vst.msk [vmem:[#allocation2 + $0x20] sm:$0xff] %vm417, 0.0
        %424 = vst.msk [vmem:[#allocation2 + $0x28] sm:$0x3] %vm420, 0.0
        %425 = vst.msk [vmem:[#allocation2 + $0x30] sm:$0xff] %vm417, 0.0
        %426 = vst.msk [vmem:[#allocation2 + $0x38] sm:$0xff] %vm417, 0.0
        %427 = vst.msk [vmem:[#allocation2 + $0x40] sm:$0x3] %vm420, 0.0
        %428 = vst.msk [vmem:[#allocation2 + $0x48] sm:$0xff] %vm417, 0.0
        %429 = vst.msk [vmem:[#allocation2 + $0x50] sm:$0xff] %vm417, 0.0
        %430 = vst.msk [vmem:[#allocation2 + $0x58] sm:$0x3] %vm420, 0.0
        %431 = vst.msk [vmem:[#allocation2 + $0x60] sm:$0xff] %vm417, 0.0
        %432 = vst.msk [vmem:[#allocation2 + $0x68] sm:$0xff] %vm417, 0.0
        %433 = vst.msk [vmem:[#allocation2 + $0x70] sm:$0x3] %vm420, 0.0
        %434 = vst.msk [vmem:[#allocation2 + $0x78] sm:$0xff] %vm417, 0.0
        %435 = vst.msk [vmem:[#allocation2 + $0x80] sm:$0xff] %vm417, 0.0
        %436 = vst.msk [vmem:[#allocation2 + $0x88] sm:$0x3] %vm420, 0.0
        %437 = vst.msk [vmem:[#allocation2 + $0x90] sm:$0xff] %vm417, 0.0
        %438 = vst.msk [vmem:[#allocation2 + $0x98] sm:$0xff] %vm417, 0.0
        %439 = vst.msk [vmem:[#allocation2 + $0xa0] sm:$0x3] %vm420, 0.0
        %440 = vst.msk [vmem:[#allocation2 + $0xa8] sm:$0xff] %vm417, 0.0
        %441 = vst.msk [vmem:[#allocation2 + $0xb0] sm:$0xff] %vm417, 0.0
        %442 = vst.msk [vmem:[#allocation2 + $0xb8] sm:$0x3] %vm420, 0.0
        %443 = vst.msk [vmem:[#allocation2 + $0xc0] sm:$0xff] %vm417, 0.0
        %444 = vst.msk [vmem:[#allocation2 + $0xc8] sm:$0xff] %vm417, 0.0
        %445 = vst.msk [vmem:[#allocation2 + $0xd0] sm:$0x3] %vm420, 0.0
        %446 = vst.msk [vmem:[#allocation2 + $0xd8] sm:$0xff] %vm417, 0.0
        %447 = vst.msk [vmem:[#allocation2 + $0xe0] sm:$0xff] %vm417, 0.0
        %448 = vst.msk [vmem:[#allocation2 + $0xe8] sm:$0x3] %vm420, 0.0
        %v449 = vld [vmem:[%s339] sm:$0xff]
        %v450 = vld [vmem:[%s339 + $0x8] sm:$0xff]
        %v451 = vld [vmem:[%s339 + $0x10] sm:$0xff]
        %v452 = vld [vmem:[%s339 + $0x18] sm:$0xff]
        %v453 = vld [vmem:[%s339 + $0x20] sm:$0xff]
        %v454 = vld [vmem:[%s339 + $0x28] sm:$0xff]
        %v455 = vld [vmem:[%s339 + $0x30] sm:$0xff]
        %v456 = vld [vmem:[%s339 + $0x38] sm:$0xff]
        %v457 = vld [vmem:[%s339 + $0x40] sm:$0xff]
        %v458 = vld [vmem:[%s339 + $0x48] sm:$0xff]
        %v459 = vld [vmem:[%s339 + $0x50] sm:$0xff]
        %v460 = vld [vmem:[%s339 + $0x58] sm:$0xff]
        %v461 = vld [vmem:[%s339 + $0x60] sm:$0xff]
        %v462 = vld [vmem:[%s339 + $0x68] sm:$0xff]
        %v463 = vld [vmem:[%s339 + $0x70] sm:$0xff]
        %v464 = vld [vmem:[%s339 + $0x78] sm:$0xff]
        %s465 = scalar_lea.vmem [#allocation2], 24
        %466 = vst.msk [vmem:[%s465 + $0x1] sm:$0xff] %vm417, %v449
        %467 = vst.msk [vmem:[%s465 + $0x9] sm:$0xff] %vm417, %v450
        %468 = vst.msk [vmem:[%s465 + $0x19] sm:$0xff] %vm417, %v451
        %469 = vst.msk [vmem:[%s465 + $0x21] sm:$0xff] %vm417, %v452
        %470 = vst.msk [vmem:[%s465 + $0x31] sm:$0xff] %vm417, %v453
        %471 = vst.msk [vmem:[%s465 + $0x39] sm:$0xff] %vm417, %v454
        %472 = vst.msk [vmem:[%s465 + $0x49] sm:$0xff] %vm417, %v455
        %473 = vst.msk [vmem:[%s465 + $0x51] sm:$0xff] %vm417, %v456
        %474 = vst.msk [vmem:[%s465 + $0x61] sm:$0xff] %vm417, %v457
        %475 = vst.msk [vmem:[%s465 + $0x69] sm:$0xff] %vm417, %v458
        %476 = vst.msk [vmem:[%s465 + $0x79] sm:$0xff] %vm417, %v459
        %477 = vst.msk [vmem:[%s465 + $0x81] sm:$0xff] %vm417, %v460
        %478 = vst.msk [vmem:[%s465 + $0x91] sm:$0xff] %vm417, %v461
        %479 = vst.msk [vmem:[%s465 + $0x99] sm:$0xff] %vm417, %v462
        %480 = vst.msk [vmem:[%s465 + $0xa9] sm:$0xff] %vm417, %v463
        %481 = vst.msk [vmem:[%s465 + $0xb1] sm:$0xff] %vm417, %v464
        %p482 = scmp.gt.s32.totalorder %s35, 0
        // Predicated region
        $region53: #{tpu_custom_call.1} parent=35 // pred_check
          %p483 = pneg %p482
        $region54: #{tpu_custom_call.1} parent=35 // pred_check_branch
          %485 = sbr.rel (%p483) target = $region56
        $region55: #{tpu_custom_call.1} parent=35 // pred_region
          %v486 = vld [vmem:[%s349] sm:$0xff]
          %v487 = vld [vmem:[%s349 + $0x8] sm:$0xff]
          %488 = vst.msk [vmem:[#allocation2 + $0x1] sm:$0xff] %vm417, %v486
          %489 = vst.msk [vmem:[#allocation2 + $0x9] sm:$0xff] %vm417, %v487
        $region56: #{tpu_custom_call.1} parent=35 // pred_fallthru
          _
        %p490 = scmp.lt.s32.totalorder %s35, 1
        // Predicated region
        $region57: #{tpu_custom_call.1} parent=35 // pred_check
          %p491 = pneg %p490
        $region58: #{tpu_custom_call.1} parent=35 // pred_check_branch
          %493 = sbr.rel (%p491) target = $region60
        $region59: #{tpu_custom_call.1} parent=35 // pred_region
          %v494 = vld [vmem:[%s359] sm:$0xff]
          %v495 = vld [vmem:[%s359 + $0x8] sm:$0xff]
          %s496 = scalar_lea.vmem [#allocation2], 216
          %497 = vst.msk [vmem:[%s496 + $0x1] sm:$0xff] %vm417, %v494
          %498 = vst.msk [vmem:[%s496 + $0x9] sm:$0xff] %vm417, %v495
        $region60: #{tpu_custom_call.1} parent=35 // pred_fallthru
          _
        %v499 = vld [vmem:[#allocation2] sm:$0xff]
        %v500 = vld [vmem:[#allocation2 + $0x8] sm:$0xff]
        %v501 = vld [vmem:[#allocation2 + $0x18] sm:$0xff]
        %v502 = vld [vmem:[#allocation2 + $0x20] sm:$0xff]
        %v503 = vld [vmem:[#allocation2 + $0x30] sm:$0xff]
        %v504 = vld [vmem:[#allocation2 + $0x38] sm:$0xff]
        %v505 = vld [vmem:[#allocation2 + $0x48] sm:$0xff]
        %v506 = vld [vmem:[#allocation2 + $0x50] sm:$0xff]
        %v507 = vld [vmem:[#allocation2 + $0x60] sm:$0xff]
        %v508 = vld [vmem:[#allocation2 + $0x68] sm:$0xff]
        %v509 = vld [vmem:[#allocation2 + $0x78] sm:$0xff]
        %v510 = vld [vmem:[#allocation2 + $0x80] sm:$0xff]
        %v511 = vld [vmem:[#allocation2 + $0x90] sm:$0xff]
        %v512 = vld [vmem:[#allocation2 + $0x98] sm:$0xff]
        %v513 = vld [vmem:[#allocation2 + $0xa8] sm:$0xff]
        %v514 = vld [vmem:[#allocation2 + $0xb0] sm:$0xff]
        %v515 = vld [vmem:[#allocation9] sm:$0xff]
        %v516 = vld [vmem:[#allocation9 + $0x8] sm:$0xff]
        %v517 = vld [vmem:[#allocation9 + $0x10] sm:$0xff]
        %v518 = vld [vmem:[#allocation9 + $0x18] sm:$0xff]
        %v519 = vld [vmem:[#allocation2 + $0x1] sm:$0xff]
        %v520 = vld [vmem:[#allocation2 + $0x9] sm:$0xff]
        %v521 = vld [vmem:[#allocation2 + $0x19] sm:$0xff]
        %v522 = vld [vmem:[#allocation2 + $0x21] sm:$0xff]
        %v523 = vld [vmem:[#allocation2 + $0x31] sm:$0xff]
        %v524 = vld [vmem:[#allocation2 + $0x39] sm:$0xff]
        %v525 = vld [vmem:[#allocation2 + $0x49] sm:$0xff]
        %v526 = vld [vmem:[#allocation2 + $0x51] sm:$0xff]
        %v527 = vld [vmem:[#allocation2 + $0x61] sm:$0xff]
        %v528 = vld [vmem:[#allocation2 + $0x69] sm:$0xff]
        %v529 = vld [vmem:[#allocation2 + $0x79] sm:$0xff]
        %v530 = vld [vmem:[#allocation2 + $0x81] sm:$0xff]
        %v531 = vld [vmem:[#allocation2 + $0x91] sm:$0xff]
        %v532 = vld [vmem:[#allocation2 + $0x99] sm:$0xff]
        %v533 = vld [vmem:[#allocation2 + $0xa9] sm:$0xff]
        %v534 = vld [vmem:[#allocation2 + $0xb1] sm:$0xff]
        %s535 = scalar_lea.vmem [#allocation9], 32
        %v536 = vld [vmem:[%s535] sm:$0xff]
        %v537 = vld [vmem:[%s535 + $0x8] sm:$0xff]
        %v538 = vld [vmem:[%s535 + $0x10] sm:$0xff]
        %v539 = vld [vmem:[%s535 + $0x18] sm:$0xff]
        %v541 = vsel %vm417, %v519, 0
        %v544 = vsel %vm417, %v520, 0
        %v547 = vsel %vm417, %v521, 0
        %v550 = vsel %vm417, %v522, 0
        %v553 = vsel %vm417, %v523, 0
        %v556 = vsel %vm417, %v524, 0
        %v559 = vsel %vm417, %v525, 0
        %v562 = vsel %vm417, %v526, 0
        %v565 = vsel %vm417, %v527, 0
        %v568 = vsel %vm417, %v528, 0
        %v571 = vsel %vm417, %v529, 0
        %v574 = vsel %vm417, %v530, 0
        %v577 = vsel %vm417, %v531, 0
        %v580 = vsel %vm417, %v532, 0
        %v583 = vsel %vm417, %v533, 0
        %v586 = vsel %vm417, %v534, 0
        %588 = vmatpush.msra.mxu0 0.0
        %589 = vmatpush.msra.mxu0 0.0
        %590 = vmatpush.msra.mxu0 0.0
        %591 = vmatpush.msra.mxu0 0.0
        %592 = vmatpush.msra.mxu0 0.0
        %593 = vmatpush.msra.mxu0 0.0
        %594 = vmatpush.msra.mxu0 0.0
        %595 = vmatpush.msra.mxu0 0.0
        %596 = vmatpush.msra.mxu0 0.0
        %597 = vmatpush.msra.mxu0 0.0
        %598 = vmatpush.msra.mxu0 0.0
        %599 = vmatpush.msra.mxu0 0.0
        %600 = vmatpush.msra.mxu0 %v539
        %601 = vmatpush.msra.mxu0 %v538
        %602 = vmatpush.msra.mxu0 %v537
        %603 = vmatpush.msra.mxu0 %v536
        %604 = vmatmul.f32.gmra.mxu0 %v541
        %v605 = vpop.f32.mrf.mxu0
        %v606 = vadd.f32 0.0, %v605
        %607 = vmatmul.f32.gmra.mxu0 %v544
        %v608 = vpop.f32.mrf.mxu0
        %v609 = vadd.f32 0.0, %v608
        %610 = vmatmul.f32.gmra.mxu0 %v547
        %v611 = vpop.f32.mrf.mxu0
        %v612 = vadd.f32 0.0, %v611
        %613 = vmatmul.f32.gmra.mxu0 %v550
        %v614 = vpop.f32.mrf.mxu0
        %v615 = vadd.f32 0.0, %v614
        %616 = vmatmul.f32.gmra.mxu0 %v553
        %v617 = vpop.f32.mrf.mxu0
        %v618 = vadd.f32 0.0, %v617
        %619 = vmatmul.f32.gmra.mxu0 %v556
        %v620 = vpop.f32.mrf.mxu0
        %v621 = vadd.f32 0.0, %v620
        %622 = vmatmul.f32.gmra.mxu0 %v559
        %v623 = vpop.f32.mrf.mxu0
        %v624 = vadd.f32 0.0, %v623
        %625 = vmatmul.f32.gmra.mxu0 %v562
        %v626 = vpop.f32.mrf.mxu0
        %v627 = vadd.f32 0.0, %v626
        %628 = vmatmul.f32.gmra.mxu0 %v565
        %v629 = vpop.f32.mrf.mxu0
        %v630 = vadd.f32 0.0, %v629
        %631 = vmatmul.f32.gmra.mxu0 %v568
        %v632 = vpop.f32.mrf.mxu0
        %v633 = vadd.f32 0.0, %v632
        %634 = vmatmul.f32.gmra.mxu0 %v571
        %v635 = vpop.f32.mrf.mxu0
        %v636 = vadd.f32 0.0, %v635
        %637 = vmatmul.f32.gmra.mxu0 %v574
        %v638 = vpop.f32.mrf.mxu0
        %v639 = vadd.f32 0.0, %v638
        %640 = vmatmul.f32.gmra.mxu0 %v577
        %v641 = vpop.f32.mrf.mxu0
        %v642 = vadd.f32 0.0, %v641
        %643 = vmatmul.f32.gmra.mxu0 %v580
        %v644 = vpop.f32.mrf.mxu0
        %v645 = vadd.f32 0.0, %v644
        %646 = vmatmul.f32.gmra.mxu0 %v583
        %v647 = vpop.f32.mrf.mxu0
        %v648 = vadd.f32 0.0, %v647
        %649 = vmatmul.f32.gmra.mxu0 %v586
        %v650 = vpop.f32.mrf.mxu0
        %v651 = vadd.f32 0.0, %v650
        %652 = vdwg.mxu0
        %v654 = vsel %vm417, %v499, 0
        %v657 = vsel %vm417, %v500, 0
        %v660 = vsel %vm417, %v501, 0
        %v663 = vsel %vm417, %v502, 0
        %v666 = vsel %vm417, %v503, 0
        %v669 = vsel %vm417, %v504, 0
        %v672 = vsel %vm417, %v505, 0
        %v675 = vsel %vm417, %v506, 0
        %v678 = vsel %vm417, %v507, 0
        %v681 = vsel %vm417, %v508, 0
        %v684 = vsel %vm417, %v509, 0
        %v687 = vsel %vm417, %v510, 0
        %v690 = vsel %vm417, %v511, 0
        %v693 = vsel %vm417, %v512, 0
        %v696 = vsel %vm417, %v513, 0
        %v699 = vsel %vm417, %v514, 0
        %701 = vmatpush.msra.mxu0 0.0
        %702 = vmatpush.msra.mxu0 0.0
        %703 = vmatpush.msra.mxu0 0.0
        %704 = vmatpush.msra.mxu0 0.0
        %705 = vmatpush.msra.mxu0 0.0
        %706 = vmatpush.msra.mxu0 0.0
        %707 = vmatpush.msra.mxu0 0.0
        %708 = vmatpush.msra.mxu0 0.0
        %709 = vmatpush.msra.mxu0 0.0
        %710 = vmatpush.msra.mxu0 0.0
        %711 = vmatpush.msra.mxu0 0.0
        %712 = vmatpush.msra.mxu0 0.0
        %713 = vmatpush.msra.mxu0 %v518
        %714 = vmatpush.msra.mxu0 %v517
        %715 = vmatpush.msra.mxu0 %v516
        %716 = vmatpush.msra.mxu0 %v515
        %717 = vmatmul.f32.gmra.mxu0 %v654
        %v718 = vpop.f32.mrf.mxu0
        %v719 = vadd.f32 %v606, %v718
        %720 = vmatmul.f32.gmra.mxu0 %v657
        %v721 = vpop.f32.mrf.mxu0
        %v722 = vadd.f32 %v609, %v721
        %723 = vmatmul.f32.gmra.mxu0 %v660
        %v724 = vpop.f32.mrf.mxu0
        %v725 = vadd.f32 %v612, %v724
        %726 = vmatmul.f32.gmra.mxu0 %v663
        %v727 = vpop.f32.mrf.mxu0
        %v728 = vadd.f32 %v615, %v727
        %729 = vmatmul.f32.gmra.mxu0 %v666
        %v730 = vpop.f32.mrf.mxu0
        %v731 = vadd.f32 %v618, %v730
        %732 = vmatmul.f32.gmra.mxu0 %v669
        %v733 = vpop.f32.mrf.mxu0
        %v734 = vadd.f32 %v621, %v733
        %735 = vmatmul.f32.gmra.mxu0 %v672
        %v736 = vpop.f32.mrf.mxu0
        %v737 = vadd.f32 %v624, %v736
        %738 = vmatmul.f32.gmra.mxu0 %v675
        %v739 = vpop.f32.mrf.mxu0
        %v740 = vadd.f32 %v627, %v739
        %741 = vmatmul.f32.gmra.mxu0 %v678
        %v742 = vpop.f32.mrf.mxu0
        %v743 = vadd.f32 %v630, %v742
        %744 = vmatmul.f32.gmra.mxu0 %v681
        %v745 = vpop.f32.mrf.mxu0
        %v746 = vadd.f32 %v633, %v745
        %747 = vmatmul.f32.gmra.mxu0 %v684
        %v748 = vpop.f32.mrf.mxu0
        %v749 = vadd.f32 %v636, %v748
        %750 = vmatmul.f32.gmra.mxu0 %v687
        %v751 = vpop.f32.mrf.mxu0
        %v752 = vadd.f32 %v639, %v751
        %753 = vmatmul.f32.gmra.mxu0 %v690
        %v754 = vpop.f32.mrf.mxu0
        %v755 = vadd.f32 %v642, %v754
        %756 = vmatmul.f32.gmra.mxu0 %v693
        %v757 = vpop.f32.mrf.mxu0
        %v758 = vadd.f32 %v645, %v757
        %759 = vmatmul.f32.gmra.mxu0 %v696
        %v760 = vpop.f32.mrf.mxu0
        %v761 = vadd.f32 %v648, %v760
        %762 = vmatmul.f32.gmra.mxu0 %v699
        %v763 = vpop.f32.mrf.mxu0
        %v764 = vadd.f32 %v651, %v763
        %765 = vdwg.mxu0
        %v766 = vld [vmem:[#allocation2 + $0x2] sm:$0xff]
        %v767 = vld [vmem:[#allocation2 + $0xa] sm:$0xff]
        %v768 = vld [vmem:[#allocation2 + $0x1a] sm:$0xff]
        %v769 = vld [vmem:[#allocation2 + $0x22] sm:$0xff]
        %v770 = vld [vmem:[#allocation2 + $0x32] sm:$0xff]
        %v771 = vld [vmem:[#allocation2 + $0x3a] sm:$0xff]
        %v772 = vld [vmem:[#allocation2 + $0x4a] sm:$0xff]
        %v773 = vld [vmem:[#allocation2 + $0x52] sm:$0xff]
        %v774 = vld [vmem:[#allocation2 + $0x62] sm:$0xff]
        %v775 = vld [vmem:[#allocation2 + $0x6a] sm:$0xff]
        %v776 = vld [vmem:[#allocation2 + $0x7a] sm:$0xff]
        %v777 = vld [vmem:[#allocation2 + $0x82] sm:$0xff]
        %v778 = vld [vmem:[#allocation2 + $0x92] sm:$0xff]
        %v779 = vld [vmem:[#allocation2 + $0x9a] sm:$0xff]
        %v780 = vld [vmem:[#allocation2 + $0xaa] sm:$0xff]
        %v781 = vld [vmem:[#allocation2 + $0xb2] sm:$0xff]
        %s782 = scalar_lea.vmem [#allocation9], 64
        %v783 = vld [vmem:[%s782] sm:$0xff]
        %v784 = vld [vmem:[%s782 + $0x8] sm:$0xff]
        %v785 = vld [vmem:[%s782 + $0x10] sm:$0xff]
        %v786 = vld [vmem:[%s782 + $0x18] sm:$0xff]
        %v788 = vsel %vm417, %v766, 0
        %v791 = vsel %vm417, %v767, 0
        %v794 = vsel %vm417, %v768, 0
        %v797 = vsel %vm417, %v769, 0
        %v800 = vsel %vm417, %v770, 0
        %v803 = vsel %vm417, %v771, 0
        %v806 = vsel %vm417, %v772, 0
        %v809 = vsel %vm417, %v773, 0
        %v812 = vsel %vm417, %v774, 0
        %v815 = vsel %vm417, %v775, 0
        %v818 = vsel %vm417, %v776, 0
        %v821 = vsel %vm417, %v777, 0
        %v824 = vsel %vm417, %v778, 0
        %v827 = vsel %vm417, %v779, 0
        %v830 = vsel %vm417, %v780, 0
        %v833 = vsel %vm417, %v781, 0
        %835 = vmatpush.msra.mxu0 0.0
        %836 = vmatpush.msra.mxu0 0.0
        %837 = vmatpush.msra.mxu0 0.0
        %838 = vmatpush.msra.mxu0 0.0
        %839 = vmatpush.msra.mxu0 0.0
        %840 = vmatpush.msra.mxu0 0.0
        %841 = vmatpush.msra.mxu0 0.0
        %842 = vmatpush.msra.mxu0 0.0
        %843 = vmatpush.msra.mxu0 0.0
        %844 = vmatpush.msra.mxu0 0.0
        %845 = vmatpush.msra.mxu0 0.0
        %846 = vmatpush.msra.mxu0 0.0
        %847 = vmatpush.msra.mxu0 %v786
        %848 = vmatpush.msra.mxu0 %v785
        %849 = vmatpush.msra.mxu0 %v784
        %850 = vmatpush.msra.mxu0 %v783
        %851 = vmatmul.f32.gmra.mxu0 %v788
        %v852 = vpop.f32.mrf.mxu0
        %v853 = vadd.f32 0.0, %v852
        %854 = vmatmul.f32.gmra.mxu0 %v791
        %v855 = vpop.f32.mrf.mxu0
        %v856 = vadd.f32 0.0, %v855
        %857 = vmatmul.f32.gmra.mxu0 %v794
        %v858 = vpop.f32.mrf.mxu0
        %v859 = vadd.f32 0.0, %v858
        %860 = vmatmul.f32.gmra.mxu0 %v797
        %v861 = vpop.f32.mrf.mxu0
        %v862 = vadd.f32 0.0, %v861
        %863 = vmatmul.f32.gmra.mxu0 %v800
        %v864 = vpop.f32.mrf.mxu0
        %v865 = vadd.f32 0.0, %v864
        %866 = vmatmul.f32.gmra.mxu0 %v803
        %v867 = vpop.f32.mrf.mxu0
        %v868 = vadd.f32 0.0, %v867
        %869 = vmatmul.f32.gmra.mxu0 %v806
        %v870 = vpop.f32.mrf.mxu0
        %v871 = vadd.f32 0.0, %v870
        %872 = vmatmul.f32.gmra.mxu0 %v809
        %v873 = vpop.f32.mrf.mxu0
        %v874 = vadd.f32 0.0, %v873
        %875 = vmatmul.f32.gmra.mxu0 %v812
        %v876 = vpop.f32.mrf.mxu0
        %v877 = vadd.f32 0.0, %v876
        %878 = vmatmul.f32.gmra.mxu0 %v815
        %v879 = vpop.f32.mrf.mxu0
        %v880 = vadd.f32 0.0, %v879
        %881 = vmatmul.f32.gmra.mxu0 %v818
        %v882 = vpop.f32.mrf.mxu0
        %v883 = vadd.f32 0.0, %v882
        %884 = vmatmul.f32.gmra.mxu0 %v821
        %v885 = vpop.f32.mrf.mxu0
        %v886 = vadd.f32 0.0, %v885
        %887 = vmatmul.f32.gmra.mxu0 %v824
        %v888 = vpop.f32.mrf.mxu0
        %v889 = vadd.f32 0.0, %v888
        %890 = vmatmul.f32.gmra.mxu0 %v827
        %v891 = vpop.f32.mrf.mxu0
        %v892 = vadd.f32 0.0, %v891
        %893 = vmatmul.f32.gmra.mxu0 %v830
        %v894 = vpop.f32.mrf.mxu0
        %v895 = vadd.f32 0.0, %v894
        %896 = vmatmul.f32.gmra.mxu0 %v833
        %v897 = vpop.f32.mrf.mxu0
        %v898 = vadd.f32 0.0, %v897
        %899 = vdwg.mxu0
        %v900 = vadd.f32 %v719, %v853
        %v901 = vadd.f32 %v722, %v856
        %v902 = vadd.f32 %v725, %v859
        %v903 = vadd.f32 %v728, %v862
        %v904 = vadd.f32 %v731, %v865
        %v905 = vadd.f32 %v734, %v868
        %v906 = vadd.f32 %v737, %v871
        %v907 = vadd.f32 %v740, %v874
        %v908 = vadd.f32 %v743, %v877
        %v909 = vadd.f32 %v746, %v880
        %v910 = vadd.f32 %v749, %v883
        %v911 = vadd.f32 %v752, %v886
        %v912 = vadd.f32 %v755, %v889
        %v913 = vadd.f32 %v758, %v892
        %v914 = vadd.f32 %v761, %v895
        %v915 = vadd.f32 %v764, %v898
        %v916 = vld [vmem:[%s465] sm:$0xff]
        %v917 = vld [vmem:[%s465 + $0x8] sm:$0xff]
        %v918 = vld [vmem:[%s465 + $0x18] sm:$0xff]
        %v919 = vld [vmem:[%s465 + $0x20] sm:$0xff]
        %v920 = vld [vmem:[%s465 + $0x30] sm:$0xff]
        %v921 = vld [vmem:[%s465 + $0x38] sm:$0xff]
        %v922 = vld [vmem:[%s465 + $0x48] sm:$0xff]
        %v923 = vld [vmem:[%s465 + $0x50] sm:$0xff]
        %v924 = vld [vmem:[%s465 + $0x60] sm:$0xff]
        %v925 = vld [vmem:[%s465 + $0x68] sm:$0xff]
        %v926 = vld [vmem:[%s465 + $0x78] sm:$0xff]
        %v927 = vld [vmem:[%s465 + $0x80] sm:$0xff]
        %v928 = vld [vmem:[%s465 + $0x90] sm:$0xff]
        %v929 = vld [vmem:[%s465 + $0x98] sm:$0xff]
        %v930 = vld [vmem:[%s465 + $0xa8] sm:$0xff]
        %v931 = vld [vmem:[%s465 + $0xb0] sm:$0xff]
        %s932 = scalar_lea.vmem [#allocation9], 96
        %v933 = vld [vmem:[%s932] sm:$0xff]
        %v934 = vld [vmem:[%s932 + $0x8] sm:$0xff]
        %v935 = vld [vmem:[%s932 + $0x10] sm:$0xff]
        %v936 = vld [vmem:[%s932 + $0x18] sm:$0xff]
        %v938 = vsel %vm417, %v916, 0
        %v941 = vsel %vm417, %v917, 0
        %v944 = vsel %vm417, %v918, 0
        %v947 = vsel %vm417, %v919, 0
        %v950 = vsel %vm417, %v920, 0
        %v953 = vsel %vm417, %v921, 0
        %v956 = vsel %vm417, %v922, 0
        %v959 = vsel %vm417, %v923, 0
        %v962 = vsel %vm417, %v924, 0
        %v965 = vsel %vm417, %v925, 0
        %v968 = vsel %vm417, %v926, 0
        %v971 = vsel %vm417, %v927, 0
        %v974 = vsel %vm417, %v928, 0
        %v977 = vsel %vm417, %v929, 0
        %v980 = vsel %vm417, %v930, 0
        %v983 = vsel %vm417, %v931, 0
        %985 = vmatpush.msra.mxu0 0.0
        %986 = vmatpush.msra.mxu0 0.0
        %987 = vmatpush.msra.mxu0 0.0
        %988 = vmatpush.msra.mxu0 0.0
        %989 = vmatpush.msra.mxu0 0.0
        %990 = vmatpush.msra.mxu0 0.0
        %991 = vmatpush.msra.mxu0 0.0
        %992 = vmatpush.msra.mxu0 0.0
        %993 = vmatpush.msra.mxu0 0.0
        %994 = vmatpush.msra.mxu0 0.0
        %995 = vmatpush.msra.mxu0 0.0
        %996 = vmatpush.msra.mxu0 0.0
        %997 = vmatpush.msra.mxu0 %v936
        %998 = vmatpush.msra.mxu0 %v935
        %999 = vmatpush.msra.mxu0 %v934
        %1000 = vmatpush.msra.mxu0 %v933
        %1001 = vmatmul.f32.gmra.mxu0 %v938
        %v1002 = vpop.f32.mrf.mxu0
        %v1003 = vadd.f32 0.0, %v1002
        %1004 = vmatmul.f32.gmra.mxu0 %v941
        %v1005 = vpop.f32.mrf.mxu0
        %v1006 = vadd.f32 0.0, %v1005
        %1007 = vmatmul.f32.gmra.mxu0 %v944
        %v1008 = vpop.f32.mrf.mxu0
        %v1009 = vadd.f32 0.0, %v1008
        %1010 = vmatmul.f32.gmra.mxu0 %v947
        %v1011 = vpop.f32.mrf.mxu0
        %v1012 = vadd.f32 0.0, %v1011
        %1013 = vmatmul.f32.gmra.mxu0 %v950
        %v1014 = vpop.f32.mrf.mxu0
        %v1015 = vadd.f32 0.0, %v1014
        %1016 = vmatmul.f32.gmra.mxu0 %v953
        %v1017 = vpop.f32.mrf.mxu0
        %v1018 = vadd.f32 0.0, %v1017
        %1019 = vmatmul.f32.gmra.mxu0 %v956
        %v1020 = vpop.f32.mrf.mxu0
        %v1021 = vadd.f32 0.0, %v1020
        %1022 = vmatmul.f32.gmra.mxu0 %v959
        %v1023 = vpop.f32.mrf.mxu0
        %v1024 = vadd.f32 0.0, %v1023
        %1025 = vmatmul.f32.gmra.mxu0 %v962
        %v1026 = vpop.f32.mrf.mxu0
        %v1027 = vadd.f32 0.0, %v1026
        %1028 = vmatmul.f32.gmra.mxu0 %v965
        %v1029 = vpop.f32.mrf.mxu0
        %v1030 = vadd.f32 0.0, %v1029
        %1031 = vmatmul.f32.gmra.mxu0 %v968
        %v1032 = vpop.f32.mrf.mxu0
        %v1033 = vadd.f32 0.0, %v1032
        %1034 = vmatmul.f32.gmra.mxu0 %v971
        %v1035 = vpop.f32.mrf.mxu0
        %v1036 = vadd.f32 0.0, %v1035
        %1037 = vmatmul.f32.gmra.mxu0 %v974
        %v1038 = vpop.f32.mrf.mxu0
        %v1039 = vadd.f32 0.0, %v1038
        %1040 = vmatmul.f32.gmra.mxu0 %v977
        %v1041 = vpop.f32.mrf.mxu0
        %v1042 = vadd.f32 0.0, %v1041
        %1043 = vmatmul.f32.gmra.mxu0 %v980
        %v1044 = vpop.f32.mrf.mxu0
        %v1045 = vadd.f32 0.0, %v1044
        %1046 = vmatmul.f32.gmra.mxu0 %v983
        %v1047 = vpop.f32.mrf.mxu0
        %v1048 = vadd.f32 0.0, %v1047
        %1049 = vdwg.mxu0
        %v1050 = vadd.f32 %v900, %v1003
        %v1051 = vadd.f32 %v901, %v1006
        %v1052 = vadd.f32 %v902, %v1009
        %v1053 = vadd.f32 %v903, %v1012
        %v1054 = vadd.f32 %v904, %v1015
        %v1055 = vadd.f32 %v905, %v1018
        %v1056 = vadd.f32 %v906, %v1021
        %v1057 = vadd.f32 %v907, %v1024
        %v1058 = vadd.f32 %v908, %v1027
        %v1059 = vadd.f32 %v909, %v1030
        %v1060 = vadd.f32 %v910, %v1033
        %v1061 = vadd.f32 %v911, %v1036
        %v1062 = vadd.f32 %v912, %v1039
        %v1063 = vadd.f32 %v913, %v1042
        %v1064 = vadd.f32 %v914, %v1045
        %v1065 = vadd.f32 %v915, %v1048
        %v1066 = vld [vmem:[%s465 + $0x1] sm:$0xff]
        %v1067 = vld [vmem:[%s465 + $0x9] sm:$0xff]
        %v1068 = vld [vmem:[%s465 + $0x19] sm:$0xff]
        %v1069 = vld [vmem:[%s465 + $0x21] sm:$0xff]
        %v1070 = vld [vmem:[%s465 + $0x31] sm:$0xff]
        %v1071 = vld [vmem:[%s465 + $0x39] sm:$0xff]
        %v1072 = vld [vmem:[%s465 + $0x49] sm:$0xff]
        %v1073 = vld [vmem:[%s465 + $0x51] sm:$0xff]
        %v1074 = vld [vmem:[%s465 + $0x61] sm:$0xff]
        %v1075 = vld [vmem:[%s465 + $0x69] sm:$0xff]
        %v1076 = vld [vmem:[%s465 + $0x79] sm:$0xff]
        %v1077 = vld [vmem:[%s465 + $0x81] sm:$0xff]
        %v1078 = vld [vmem:[%s465 + $0x91] sm:$0xff]
        %v1079 = vld [vmem:[%s465 + $0x99] sm:$0xff]
        %v1080 = vld [vmem:[%s465 + $0xa9] sm:$0xff]
        %v1081 = vld [vmem:[%s465 + $0xb1] sm:$0xff]
        %s1082 = scalar_lea.vmem [#allocation9], 128
        %v1083 = vld [vmem:[%s1082] sm:$0xff]
        %v1084 = vld [vmem:[%s1082 + $0x8] sm:$0xff]
        %v1085 = vld [vmem:[%s1082 + $0x10] sm:$0xff]
        %v1086 = vld [vmem:[%s1082 + $0x18] sm:$0xff]
        %v1088 = vsel %vm417, %v1066, 0
        %v1091 = vsel %vm417, %v1067, 0
        %v1094 = vsel %vm417, %v1068, 0
        %v1097 = vsel %vm417, %v1069, 0
        %v1100 = vsel %vm417, %v1070, 0
        %v1103 = vsel %vm417, %v1071, 0
        %v1106 = vsel %vm417, %v1072, 0
        %v1109 = vsel %vm417, %v1073, 0
        %v1112 = vsel %vm417, %v1074, 0
        %v1115 = vsel %vm417, %v1075, 0
        %v1118 = vsel %vm417, %v1076, 0
        %v1121 = vsel %vm417, %v1077, 0
        %v1124 = vsel %vm417, %v1078, 0
        %v1127 = vsel %vm417, %v1079, 0
        %v1130 = vsel %vm417, %v1080, 0
        %v1133 = vsel %vm417, %v1081, 0
        %1135 = vmatpush.msra.mxu0 0.0
        %1136 = vmatpush.msra.mxu0 0.0
        %1137 = vmatpush.msra.mxu0 0.0
        %1138 = vmatpush.msra.mxu0 0.0
        %1139 = vmatpush.msra.mxu0 0.0
        %1140 = vmatpush.msra.mxu0 0.0
        %1141 = vmatpush.msra.mxu0 0.0
        %1142 = vmatpush.msra.mxu0 0.0
        %1143 = vmatpush.msra.mxu0 0.0
        %1144 = vmatpush.msra.mxu0 0.0
        %1145 = vmatpush.msra.mxu0 0.0
        %1146 = vmatpush.msra.mxu0 0.0
        %1147 = vmatpush.msra.mxu0 %v1086
        %1148 = vmatpush.msra.mxu0 %v1085
        %1149 = vmatpush.msra.mxu0 %v1084
        %1150 = vmatpush.msra.mxu0 %v1083
        %1151 = vmatmul.f32.gmra.mxu0 %v1088
        %v1152 = vpop.f32.mrf.mxu0
        %v1153 = vadd.f32 0.0, %v1152
        %1154 = vmatmul.f32.gmra.mxu0 %v1091
        %v1155 = vpop.f32.mrf.mxu0
        %v1156 = vadd.f32 0.0, %v1155
        %1157 = vmatmul.f32.gmra.mxu0 %v1094
        %v1158 = vpop.f32.mrf.mxu0
        %v1159 = vadd.f32 0.0, %v1158
        %1160 = vmatmul.f32.gmra.mxu0 %v1097
        %v1161 = vpop.f32.mrf.mxu0
        %v1162 = vadd.f32 0.0, %v1161
        %1163 = vmatmul.f32.gmra.mxu0 %v1100
        %v1164 = vpop.f32.mrf.mxu0
        %v1165 = vadd.f32 0.0, %v1164
        %1166 = vmatmul.f32.gmra.mxu0 %v1103
        %v1167 = vpop.f32.mrf.mxu0
        %v1168 = vadd.f32 0.0, %v1167
        %1169 = vmatmul.f32.gmra.mxu0 %v1106
        %v1170 = vpop.f32.mrf.mxu0
        %v1171 = vadd.f32 0.0, %v1170
        %1172 = vmatmul.f32.gmra.mxu0 %v1109
        %v1173 = vpop.f32.mrf.mxu0
        %v1174 = vadd.f32 0.0, %v1173
        %1175 = vmatmul.f32.gmra.mxu0 %v1112
        %v1176 = vpop.f32.mrf.mxu0
        %v1177 = vadd.f32 0.0, %v1176
        %1178 = vmatmul.f32.gmra.mxu0 %v1115
        %v1179 = vpop.f32.mrf.mxu0
        %v1180 = vadd.f32 0.0, %v1179
        %1181 = vmatmul.f32.gmra.mxu0 %v1118
        %v1182 = vpop.f32.mrf.mxu0
        %v1183 = vadd.f32 0.0, %v1182
        %1184 = vmatmul.f32.gmra.mxu0 %v1121
        %v1185 = vpop.f32.mrf.mxu0
        %v1186 = vadd.f32 0.0, %v1185
        %1187 = vmatmul.f32.gmra.mxu0 %v1124
        %v1188 = vpop.f32.mrf.mxu0
        %v1189 = vadd.f32 0.0, %v1188
        %1190 = vmatmul.f32.gmra.mxu0 %v1127
        %v1191 = vpop.f32.mrf.mxu0
        %v1192 = vadd.f32 0.0, %v1191
        %1193 = vmatmul.f32.gmra.mxu0 %v1130
        %v1194 = vpop.f32.mrf.mxu0
        %v1195 = vadd.f32 0.0, %v1194
        %1196 = vmatmul.f32.gmra.mxu0 %v1133
        %v1197 = vpop.f32.mrf.mxu0
        %v1198 = vadd.f32 0.0, %v1197
        %1199 = vdwg.mxu0
        %v1200 = vadd.f32 %v1050, %v1153
        %v1201 = vadd.f32 %v1051, %v1156
        %v1202 = vadd.f32 %v1052, %v1159
        %v1203 = vadd.f32 %v1053, %v1162
        %v1204 = vadd.f32 %v1054, %v1165
        %v1205 = vadd.f32 %v1055, %v1168
        %v1206 = vadd.f32 %v1056, %v1171
        %v1207 = vadd.f32 %v1057, %v1174
        %v1208 = vadd.f32 %v1058, %v1177
        %v1209 = vadd.f32 %v1059, %v1180
        %v1210 = vadd.f32 %v1060, %v1183
        %v1211 = vadd.f32 %v1061, %v1186
        %v1212 = vadd.f32 %v1062, %v1189
        %v1213 = vadd.f32 %v1063, %v1192
        %v1214 = vadd.f32 %v1064, %v1195
        %v1215 = vadd.f32 %v1065, %v1198
        %v1216 = vld [vmem:[%s465 + $0x2] sm:$0xff]
        %v1217 = vld [vmem:[%s465 + $0xa] sm:$0xff]
        %v1218 = vld [vmem:[%s465 + $0x1a] sm:$0xff]
        %v1219 = vld [vmem:[%s465 + $0x22] sm:$0xff]
        %v1220 = vld [vmem:[%s465 + $0x32] sm:$0xff]
        %v1221 = vld [vmem:[%s465 + $0x3a] sm:$0xff]
        %v1222 = vld [vmem:[%s465 + $0x4a] sm:$0xff]
        %v1223 = vld [vmem:[%s465 + $0x52] sm:$0xff]
        %v1224 = vld [vmem:[%s465 + $0x62] sm:$0xff]
        %v1225 = vld [vmem:[%s465 + $0x6a] sm:$0xff]
        %v1226 = vld [vmem:[%s465 + $0x7a] sm:$0xff]
        %v1227 = vld [vmem:[%s465 + $0x82] sm:$0xff]
        %v1228 = vld [vmem:[%s465 + $0x92] sm:$0xff]
        %v1229 = vld [vmem:[%s465 + $0x9a] sm:$0xff]
        %v1230 = vld [vmem:[%s465 + $0xaa] sm:$0xff]
        %v1231 = vld [vmem:[%s465 + $0xb2] sm:$0xff]
        %s1232 = scalar_lea.vmem [#allocation9], 160
        %v1233 = vld [vmem:[%s1232] sm:$0xff]
        %v1234 = vld [vmem:[%s1232 + $0x8] sm:$0xff]
        %v1235 = vld [vmem:[%s1232 + $0x10] sm:$0xff]
        %v1236 = vld [vmem:[%s1232 + $0x18] sm:$0xff]
        %v1238 = vsel %vm417, %v1216, 0
        %v1241 = vsel %vm417, %v1217, 0
        %v1244 = vsel %vm417, %v1218, 0
        %v1247 = vsel %vm417, %v1219, 0
        %v1250 = vsel %vm417, %v1220, 0
        %v1253 = vsel %vm417, %v1221, 0
        %v1256 = vsel %vm417, %v1222, 0
        %v1259 = vsel %vm417, %v1223, 0
        %v1262 = vsel %vm417, %v1224, 0
        %v1265 = vsel %vm417, %v1225, 0
        %v1268 = vsel %vm417, %v1226, 0
        %v1271 = vsel %vm417, %v1227, 0
        %v1274 = vsel %vm417, %v1228, 0
        %v1277 = vsel %vm417, %v1229, 0
        %v1280 = vsel %vm417, %v1230, 0
        %v1283 = vsel %vm417, %v1231, 0
        %1285 = vmatpush.msra.mxu0 0.0
        %1286 = vmatpush.msra.mxu0 0.0
        %1287 = vmatpush.msra.mxu0 0.0
        %1288 = vmatpush.msra.mxu0 0.0
        %1289 = vmatpush.msra.mxu0 0.0
        %1290 = vmatpush.msra.mxu0 0.0
        %1291 = vmatpush.msra.mxu0 0.0
        %1292 = vmatpush.msra.mxu0 0.0
        %1293 = vmatpush.msra.mxu0 0.0
        %1294 = vmatpush.msra.mxu0 0.0
        %1295 = vmatpush.msra.mxu0 0.0
        %1296 = vmatpush.msra.mxu0 0.0
        %1297 = vmatpush.msra.mxu0 %v1236
        %1298 = vmatpush.msra.mxu0 %v1235
        %1299 = vmatpush.msra.mxu0 %v1234
        %1300 = vmatpush.msra.mxu0 %v1233
        %1301 = vmatmul.f32.gmra.mxu0 %v1238
        %v1302 = vpop.f32.mrf.mxu0
        %v1303 = vadd.f32 0.0, %v1302
        %1304 = vmatmul.f32.gmra.mxu0 %v1241
        %v1305 = vpop.f32.mrf.mxu0
        %v1306 = vadd.f32 0.0, %v1305
        %1307 = vmatmul.f32.gmra.mxu0 %v1244
        %v1308 = vpop.f32.mrf.mxu0
        %v1309 = vadd.f32 0.0, %v1308
        %1310 = vmatmul.f32.gmra.mxu0 %v1247
        %v1311 = vpop.f32.mrf.mxu0
        %v1312 = vadd.f32 0.0, %v1311
        %1313 = vmatmul.f32.gmra.mxu0 %v1250
        %v1314 = vpop.f32.mrf.mxu0
        %v1315 = vadd.f32 0.0, %v1314
        %1316 = vmatmul.f32.gmra.mxu0 %v1253
        %v1317 = vpop.f32.mrf.mxu0
        %v1318 = vadd.f32 0.0, %v1317
        %1319 = vmatmul.f32.gmra.mxu0 %v1256
        %v1320 = vpop.f32.mrf.mxu0
        %v1321 = vadd.f32 0.0, %v1320
        %1322 = vmatmul.f32.gmra.mxu0 %v1259
        %v1323 = vpop.f32.mrf.mxu0
        %v1324 = vadd.f32 0.0, %v1323
        %1325 = vmatmul.f32.gmra.mxu0 %v1262
        %v1326 = vpop.f32.mrf.mxu0
        %v1327 = vadd.f32 0.0, %v1326
        %1328 = vmatmul.f32.gmra.mxu0 %v1265
        %v1329 = vpop.f32.mrf.mxu0
        %v1330 = vadd.f32 0.0, %v1329
        %1331 = vmatmul.f32.gmra.mxu0 %v1268
        %v1332 = vpop.f32.mrf.mxu0
        %v1333 = vadd.f32 0.0, %v1332
        %1334 = vmatmul.f32.gmra.mxu0 %v1271
        %v1335 = vpop.f32.mrf.mxu0
        %v1336 = vadd.f32 0.0, %v1335
        %1337 = vmatmul.f32.gmra.mxu0 %v1274
        %v1338 = vpop.f32.mrf.mxu0
        %v1339 = vadd.f32 0.0, %v1338
        %1340 = vmatmul.f32.gmra.mxu0 %v1277
        %v1341 = vpop.f32.mrf.mxu0
        %v1342 = vadd.f32 0.0, %v1341
        %1343 = vmatmul.f32.gmra.mxu0 %v1280
        %v1344 = vpop.f32.mrf.mxu0
        %v1345 = vadd.f32 0.0, %v1344
        %1346 = vmatmul.f32.gmra.mxu0 %v1283
        %v1347 = vpop.f32.mrf.mxu0
        %v1348 = vadd.f32 0.0, %v1347
        %1349 = vdwg.mxu0
        %v1350 = vadd.f32 %v1200, %v1303
        %v1351 = vadd.f32 %v1201, %v1306
        %v1352 = vadd.f32 %v1202, %v1309
        %v1353 = vadd.f32 %v1203, %v1312
        %v1354 = vadd.f32 %v1204, %v1315
        %v1355 = vadd.f32 %v1205, %v1318
        %v1356 = vadd.f32 %v1206, %v1321
        %v1357 = vadd.f32 %v1207, %v1324
        %v1358 = vadd.f32 %v1208, %v1327
        %v1359 = vadd.f32 %v1209, %v1330
        %v1360 = vadd.f32 %v1210, %v1333
        %v1361 = vadd.f32 %v1211, %v1336
        %v1362 = vadd.f32 %v1212, %v1339
        %v1363 = vadd.f32 %v1213, %v1342
        %v1364 = vadd.f32 %v1214, %v1345
        %v1365 = vadd.f32 %v1215, %v1348
        %s1366 = scalar_lea.vmem [#allocation2], 48
        %v1367 = vld [vmem:[%s1366] sm:$0xff]
        %v1368 = vld [vmem:[%s1366 + $0x8] sm:$0xff]
        %v1369 = vld [vmem:[%s1366 + $0x18] sm:$0xff]
        %v1370 = vld [vmem:[%s1366 + $0x20] sm:$0xff]
        %v1371 = vld [vmem:[%s1366 + $0x30] sm:$0xff]
        %v1372 = vld [vmem:[%s1366 + $0x38] sm:$0xff]
        %v1373 = vld [vmem:[%s1366 + $0x48] sm:$0xff]
        %v1374 = vld [vmem:[%s1366 + $0x50] sm:$0xff]
        %v1375 = vld [vmem:[%s1366 + $0x60] sm:$0xff]
        %v1376 = vld [vmem:[%s1366 + $0x68] sm:$0xff]
        %v1377 = vld [vmem:[%s1366 + $0x78] sm:$0xff]
        %v1378 = vld [vmem:[%s1366 + $0x80] sm:$0xff]
        %v1379 = vld [vmem:[%s1366 + $0x90] sm:$0xff]
        %v1380 = vld [vmem:[%s1366 + $0x98] sm:$0xff]
        %v1381 = vld [vmem:[%s1366 + $0xa8] sm:$0xff]
        %v1382 = vld [vmem:[%s1366 + $0xb0] sm:$0xff]
        %s1383 = scalar_lea.vmem [#allocation9], 192
        %v1384 = vld [vmem:[%s1383] sm:$0xff]
        %v1385 = vld [vmem:[%s1383 + $0x8] sm:$0xff]
        %v1386 = vld [vmem:[%s1383 + $0x10] sm:$0xff]
        %v1387 = vld [vmem:[%s1383 + $0x18] sm:$0xff]
        %v1389 = vsel %vm417, %v1367, 0
        %v1392 = vsel %vm417, %v1368, 0
        %v1395 = vsel %vm417, %v1369, 0
        %v1398 = vsel %vm417, %v1370, 0
        %v1401 = vsel %vm417, %v1371, 0
        %v1404 = vsel %vm417, %v1372, 0
        %v1407 = vsel %vm417, %v1373, 0
        %v1410 = vsel %vm417, %v1374, 0
        %v1413 = vsel %vm417, %v1375, 0
        %v1416 = vsel %vm417, %v1376, 0
        %v1419 = vsel %vm417, %v1377, 0
        %v1422 = vsel %vm417, %v1378, 0
        %v1425 = vsel %vm417, %v1379, 0
        %v1428 = vsel %vm417, %v1380, 0
        %v1431 = vsel %vm417, %v1381, 0
        %v1434 = vsel %vm417, %v1382, 0
        %1436 = vmatpush.msra.mxu0 0.0
        %1437 = vmatpush.msra.mxu0 0.0
        %1438 = vmatpush.msra.mxu0 0.0
        %1439 = vmatpush.msra.mxu0 0.0
        %1440 = vmatpush.msra.mxu0 0.0
        %1441 = vmatpush.msra.mxu0 0.0
        %1442 = vmatpush.msra.mxu0 0.0
        %1443 = vmatpush.msra.mxu0 0.0
        %1444 = vmatpush.msra.mxu0 0.0
        %1445 = vmatpush.msra.mxu0 0.0
        %1446 = vmatpush.msra.mxu0 0.0
        %1447 = vmatpush.msra.mxu0 0.0
        %1448 = vmatpush.msra.mxu0 %v1387
        %1449 = vmatpush.msra.mxu0 %v1386
        %1450 = vmatpush.msra.mxu0 %v1385
        %1451 = vmatpush.msra.mxu0 %v1384
        %1452 = vmatmul.f32.gmra.mxu0 %v1389
        %v1453 = vpop.f32.mrf.mxu0
        %v1454 = vadd.f32 0.0, %v1453
        %1455 = vmatmul.f32.gmra.mxu0 %v1392
        %v1456 = vpop.f32.mrf.mxu0
        %v1457 = vadd.f32 0.0, %v1456
        %1458 = vmatmul.f32.gmra.mxu0 %v1395
        %v1459 = vpop.f32.mrf.mxu0
        %v1460 = vadd.f32 0.0, %v1459
        %1461 = vmatmul.f32.gmra.mxu0 %v1398
        %v1462 = vpop.f32.mrf.mxu0
        %v1463 = vadd.f32 0.0, %v1462
        %1464 = vmatmul.f32.gmra.mxu0 %v1401
        %v1465 = vpop.f32.mrf.mxu0
        %v1466 = vadd.f32 0.0, %v1465
        %1467 = vmatmul.f32.gmra.mxu0 %v1404
        %v1468 = vpop.f32.mrf.mxu0
        %v1469 = vadd.f32 0.0, %v1468
        %1470 = vmatmul.f32.gmra.mxu0 %v1407
        %v1471 = vpop.f32.mrf.mxu0
        %v1472 = vadd.f32 0.0, %v1471
        %1473 = vmatmul.f32.gmra.mxu0 %v1410
        %v1474 = vpop.f32.mrf.mxu0
        %v1475 = vadd.f32 0.0, %v1474
        %1476 = vmatmul.f32.gmra.mxu0 %v1413
        %v1477 = vpop.f32.mrf.mxu0
        %v1478 = vadd.f32 0.0, %v1477
        %1479 = vmatmul.f32.gmra.mxu0 %v1416
        %v1480 = vpop.f32.mrf.mxu0
        %v1481 = vadd.f32 0.0, %v1480
        %1482 = vmatmul.f32.gmra.mxu0 %v1419
        %v1483 = vpop.f32.mrf.mxu0
        %v1484 = vadd.f32 0.0, %v1483
        %1485 = vmatmul.f32.gmra.mxu0 %v1422
        %v1486 = vpop.f32.mrf.mxu0
        %v1487 = vadd.f32 0.0, %v1486
        %1488 = vmatmul.f32.gmra.mxu0 %v1425
        %v1489 = vpop.f32.mrf.mxu0
        %v1490 = vadd.f32 0.0, %v1489
        %1491 = vmatmul.f32.gmra.mxu0 %v1428
        %v1492 = vpop.f32.mrf.mxu0
        %v1493 = vadd.f32 0.0, %v1492
        %1494 = vmatmul.f32.gmra.mxu0 %v1431
        %v1495 = vpop.f32.mrf.mxu0
        %v1496 = vadd.f32 0.0, %v1495
        %1497 = vmatmul.f32.gmra.mxu0 %v1434
        %v1498 = vpop.f32.mrf.mxu0
        %v1499 = vadd.f32 0.0, %v1498
        %1500 = vdwg.mxu0
        %v1501 = vadd.f32 %v1350, %v1454
        %v1502 = vadd.f32 %v1351, %v1457
        %v1503 = vadd.f32 %v1352, %v1460
        %v1504 = vadd.f32 %v1353, %v1463
        %v1505 = vadd.f32 %v1354, %v1466
        %v1506 = vadd.f32 %v1355, %v1469
        %v1507 = vadd.f32 %v1356, %v1472
        %v1508 = vadd.f32 %v1357, %v1475
        %v1509 = vadd.f32 %v1358, %v1478
        %v1510 = vadd.f32 %v1359, %v1481
        %v1511 = vadd.f32 %v1360, %v1484
        %v1512 = vadd.f32 %v1361, %v1487
        %v1513 = vadd.f32 %v1362, %v1490
        %v1514 = vadd.f32 %v1363, %v1493
        %v1515 = vadd.f32 %v1364, %v1496
        %v1516 = vadd.f32 %v1365, %v1499
        %v1517 = vld [vmem:[%s1366 + $0x1] sm:$0xff]
        %v1518 = vld [vmem:[%s1366 + $0x9] sm:$0xff]
        %v1519 = vld [vmem:[%s1366 + $0x19] sm:$0xff]
        %v1520 = vld [vmem:[%s1366 + $0x21] sm:$0xff]
        %v1521 = vld [vmem:[%s1366 + $0x31] sm:$0xff]
        %v1522 = vld [vmem:[%s1366 + $0x39] sm:$0xff]
        %v1523 = vld [vmem:[%s1366 + $0x49] sm:$0xff]
        %v1524 = vld [vmem:[%s1366 + $0x51] sm:$0xff]
        %v1525 = vld [vmem:[%s1366 + $0x61] sm:$0xff]
        %v1526 = vld [vmem:[%s1366 + $0x69] sm:$0xff]
        %v1527 = vld [vmem:[%s1366 + $0x79] sm:$0xff]
        %v1528 = vld [vmem:[%s1366 + $0x81] sm:$0xff]
        %v1529 = vld [vmem:[%s1366 + $0x91] sm:$0xff]
        %v1530 = vld [vmem:[%s1366 + $0x99] sm:$0xff]
        %v1531 = vld [vmem:[%s1366 + $0xa9] sm:$0xff]
        %v1532 = vld [vmem:[%s1366 + $0xb1] sm:$0xff]
        %s1533 = scalar_lea.vmem [#allocation9], 224
        %v1534 = vld [vmem:[%s1533] sm:$0xff]
        %v1535 = vld [vmem:[%s1533 + $0x8] sm:$0xff]
        %v1536 = vld [vmem:[%s1533 + $0x10] sm:$0xff]
        %v1537 = vld [vmem:[%s1533 + $0x18] sm:$0xff]
        %v1539 = vsel %vm417, %v1517, 0
        %v1542 = vsel %vm417, %v1518, 0
        %v1545 = vsel %vm417, %v1519, 0
        %v1548 = vsel %vm417, %v1520, 0
        %v1551 = vsel %vm417, %v1521, 0
        %v1554 = vsel %vm417, %v1522, 0
        %v1557 = vsel %vm417, %v1523, 0
        %v1560 = vsel %vm417, %v1524, 0
        %v1563 = vsel %vm417, %v1525, 0
        %v1566 = vsel %vm417, %v1526, 0
        %v1569 = vsel %vm417, %v1527, 0
        %v1572 = vsel %vm417, %v1528, 0
        %v1575 = vsel %vm417, %v1529, 0
        %v1578 = vsel %vm417, %v1530, 0
        %v1581 = vsel %vm417, %v1531, 0
        %v1584 = vsel %vm417, %v1532, 0
        %1586 = vmatpush.msra.mxu0 0.0
        %1587 = vmatpush.msra.mxu0 0.0
        %1588 = vmatpush.msra.mxu0 0.0
        %1589 = vmatpush.msra.mxu0 0.0
        %1590 = vmatpush.msra.mxu0 0.0
        %1591 = vmatpush.msra.mxu0 0.0
        %1592 = vmatpush.msra.mxu0 0.0
        %1593 = vmatpush.msra.mxu0 0.0
        %1594 = vmatpush.msra.mxu0 0.0
        %1595 = vmatpush.msra.mxu0 0.0
        %1596 = vmatpush.msra.mxu0 0.0
        %1597 = vmatpush.msra.mxu0 0.0
        %1598 = vmatpush.msra.mxu0 %v1537
        %1599 = vmatpush.msra.mxu0 %v1536
        %1600 = vmatpush.msra.mxu0 %v1535
        %1601 = vmatpush.msra.mxu0 %v1534
        %1602 = vmatmul.f32.gmra.mxu0 %v1539
        %v1603 = vpop.f32.mrf.mxu0
        %v1604 = vadd.f32 0.0, %v1603
        %1605 = vmatmul.f32.gmra.mxu0 %v1542
        %v1606 = vpop.f32.mrf.mxu0
        %v1607 = vadd.f32 0.0, %v1606
        %1608 = vmatmul.f32.gmra.mxu0 %v1545
        %v1609 = vpop.f32.mrf.mxu0
        %v1610 = vadd.f32 0.0, %v1609
        %1611 = vmatmul.f32.gmra.mxu0 %v1548
        %v1612 = vpop.f32.mrf.mxu0
        %v1613 = vadd.f32 0.0, %v1612
        %1614 = vmatmul.f32.gmra.mxu0 %v1551
        %v1615 = vpop.f32.mrf.mxu0
        %v1616 = vadd.f32 0.0, %v1615
        %1617 = vmatmul.f32.gmra.mxu0 %v1554
        %v1618 = vpop.f32.mrf.mxu0
        %v1619 = vadd.f32 0.0, %v1618
        %1620 = vmatmul.f32.gmra.mxu0 %v1557
        %v1621 = vpop.f32.mrf.mxu0
        %v1622 = vadd.f32 0.0, %v1621
        %1623 = vmatmul.f32.gmra.mxu0 %v1560
        %v1624 = vpop.f32.mrf.mxu0
        %v1625 = vadd.f32 0.0, %v1624
        %1626 = vmatmul.f32.gmra.mxu0 %v1563
        %v1627 = vpop.f32.mrf.mxu0
        %v1628 = vadd.f32 0.0, %v1627
        %1629 = vmatmul.f32.gmra.mxu0 %v1566
        %v1630 = vpop.f32.mrf.mxu0
        %v1631 = vadd.f32 0.0, %v1630
        %1632 = vmatmul.f32.gmra.mxu0 %v1569
        %v1633 = vpop.f32.mrf.mxu0
        %v1634 = vadd.f32 0.0, %v1633
        %1635 = vmatmul.f32.gmra.mxu0 %v1572
        %v1636 = vpop.f32.mrf.mxu0
        %v1637 = vadd.f32 0.0, %v1636
        %1638 = vmatmul.f32.gmra.mxu0 %v1575
        %v1639 = vpop.f32.mrf.mxu0
        %v1640 = vadd.f32 0.0, %v1639
        %1641 = vmatmul.f32.gmra.mxu0 %v1578
        %v1642 = vpop.f32.mrf.mxu0
        %v1643 = vadd.f32 0.0, %v1642
        %1644 = vmatmul.f32.gmra.mxu0 %v1581
        %v1645 = vpop.f32.mrf.mxu0
        %v1646 = vadd.f32 0.0, %v1645
        %1647 = vmatmul.f32.gmra.mxu0 %v1584
        %v1648 = vpop.f32.mrf.mxu0
        %v1649 = vadd.f32 0.0, %v1648
        %1650 = vdwg.mxu0
        %v1651 = vadd.f32 %v1501, %v1604
        %v1652 = vadd.f32 %v1502, %v1607
        %v1653 = vadd.f32 %v1503, %v1610
        %v1654 = vadd.f32 %v1504, %v1613
        %v1655 = vadd.f32 %v1505, %v1616
        %v1656 = vadd.f32 %v1506, %v1619
        %v1657 = vadd.f32 %v1507, %v1622
        %v1658 = vadd.f32 %v1508, %v1625
        %v1659 = vadd.f32 %v1509, %v1628
        %v1660 = vadd.f32 %v1510, %v1631
        %v1661 = vadd.f32 %v1511, %v1634
        %v1662 = vadd.f32 %v1512, %v1637
        %v1663 = vadd.f32 %v1513, %v1640
        %v1664 = vadd.f32 %v1514, %v1643
        %v1665 = vadd.f32 %v1515, %v1646
        %v1666 = vadd.f32 %v1516, %v1649
        %v1667 = vld [vmem:[%s1366 + $0x2] sm:$0xff]
        %v1668 = vld [vmem:[%s1366 + $0xa] sm:$0xff]
        %v1669 = vld [vmem:[%s1366 + $0x1a] sm:$0xff]
        %v1670 = vld [vmem:[%s1366 + $0x22] sm:$0xff]
        %v1671 = vld [vmem:[%s1366 + $0x32] sm:$0xff]
        %v1672 = vld [vmem:[%s1366 + $0x3a] sm:$0xff]
        %v1673 = vld [vmem:[%s1366 + $0x4a] sm:$0xff]
        %v1674 = vld [vmem:[%s1366 + $0x52] sm:$0xff]
        %v1675 = vld [vmem:[%s1366 + $0x62] sm:$0xff]
        %v1676 = vld [vmem:[%s1366 + $0x6a] sm:$0xff]
        %v1677 = vld [vmem:[%s1366 + $0x7a] sm:$0xff]
        %v1678 = vld [vmem:[%s1366 + $0x82] sm:$0xff]
        %v1679 = vld [vmem:[%s1366 + $0x92] sm:$0xff]
        %v1680 = vld [vmem:[%s1366 + $0x9a] sm:$0xff]
        %v1681 = vld [vmem:[%s1366 + $0xaa] sm:$0xff]
        %v1682 = vld [vmem:[%s1366 + $0xb2] sm:$0xff]
        %s1683 = scalar_lea.vmem [#allocation9], 256
        %v1684 = vld [vmem:[%s1683] sm:$0xff]
        %v1685 = vld [vmem:[%s1683 + $0x8] sm:$0xff]
        %v1686 = vld [vmem:[%s1683 + $0x10] sm:$0xff]
        %v1687 = vld [vmem:[%s1683 + $0x18] sm:$0xff]
        %v1689 = vsel %vm417, %v1667, 0
        %v1692 = vsel %vm417, %v1668, 0
        %v1695 = vsel %vm417, %v1669, 0
        %v1698 = vsel %vm417, %v1670, 0
        %v1701 = vsel %vm417, %v1671, 0
        %v1704 = vsel %vm417, %v1672, 0
        %v1707 = vsel %vm417, %v1673, 0
        %v1710 = vsel %vm417, %v1674, 0
        %v1713 = vsel %vm417, %v1675, 0
        %v1716 = vsel %vm417, %v1676, 0
        %v1719 = vsel %vm417, %v1677, 0
        %v1722 = vsel %vm417, %v1678, 0
        %v1725 = vsel %vm417, %v1679, 0
        %v1728 = vsel %vm417, %v1680, 0
        %v1731 = vsel %vm417, %v1681, 0
        %v1734 = vsel %vm417, %v1682, 0
        %1736 = vmatpush.msra.mxu0 0.0
        %1737 = vmatpush.msra.mxu0 0.0
        %1738 = vmatpush.msra.mxu0 0.0
        %1739 = vmatpush.msra.mxu0 0.0
        %1740 = vmatpush.msra.mxu0 0.0
        %1741 = vmatpush.msra.mxu0 0.0
        %1742 = vmatpush.msra.mxu0 0.0
        %1743 = vmatpush.msra.mxu0 0.0
        %1744 = vmatpush.msra.mxu0 0.0
        %1745 = vmatpush.msra.mxu0 0.0
        %1746 = vmatpush.msra.mxu0 0.0
        %1747 = vmatpush.msra.mxu0 0.0
        %1748 = vmatpush.msra.mxu0 %v1687
        %1749 = vmatpush.msra.mxu0 %v1686
        %1750 = vmatpush.msra.mxu0 %v1685
        %1751 = vmatpush.msra.mxu0 %v1684
        %1752 = vmatmul.f32.gmra.mxu0 %v1689
        %v1753 = vpop.f32.mrf.mxu0
        %v1754 = vadd.f32 0.0, %v1753
        %1755 = vmatmul.f32.gmra.mxu0 %v1692
        %v1756 = vpop.f32.mrf.mxu0
        %v1757 = vadd.f32 0.0, %v1756
        %1758 = vmatmul.f32.gmra.mxu0 %v1695
        %v1759 = vpop.f32.mrf.mxu0
        %v1760 = vadd.f32 0.0, %v1759
        %1761 = vmatmul.f32.gmra.mxu0 %v1698
        %v1762 = vpop.f32.mrf.mxu0
        %v1763 = vadd.f32 0.0, %v1762
        %1764 = vmatmul.f32.gmra.mxu0 %v1701
        %v1765 = vpop.f32.mrf.mxu0
        %v1766 = vadd.f32 0.0, %v1765
        %1767 = vmatmul.f32.gmra.mxu0 %v1704
        %v1768 = vpop.f32.mrf.mxu0
        %v1769 = vadd.f32 0.0, %v1768
        %1770 = vmatmul.f32.gmra.mxu0 %v1707
        %v1771 = vpop.f32.mrf.mxu0
        %v1772 = vadd.f32 0.0, %v1771
        %1773 = vmatmul.f32.gmra.mxu0 %v1710
        %v1774 = vpop.f32.mrf.mxu0
        %v1775 = vadd.f32 0.0, %v1774
        %1776 = vmatmul.f32.gmra.mxu0 %v1713
        %v1777 = vpop.f32.mrf.mxu0
        %v1778 = vadd.f32 0.0, %v1777
        %1779 = vmatmul.f32.gmra.mxu0 %v1716
        %v1780 = vpop.f32.mrf.mxu0
        %v1781 = vadd.f32 0.0, %v1780
        %1782 = vmatmul.f32.gmra.mxu0 %v1719
        %v1783 = vpop.f32.mrf.mxu0
        %v1784 = vadd.f32 0.0, %v1783
        %1785 = vmatmul.f32.gmra.mxu0 %v1722
        %v1786 = vpop.f32.mrf.mxu0
        %v1787 = vadd.f32 0.0, %v1786
        %1788 = vmatmul.f32.gmra.mxu0 %v1725
        %v1789 = vpop.f32.mrf.mxu0
        %v1790 = vadd.f32 0.0, %v1789
        %1791 = vmatmul.f32.gmra.mxu0 %v1728
        %v1792 = vpop.f32.mrf.mxu0
        %v1793 = vadd.f32 0.0, %v1792
        %1794 = vmatmul.f32.gmra.mxu0 %v1731
        %v1795 = vpop.f32.mrf.mxu0
        %v1796 = vadd.f32 0.0, %v1795
        %1797 = vmatmul.f32.gmra.mxu0 %v1734
        %v1798 = vpop.f32.mrf.mxu0
        %v1799 = vadd.f32 0.0, %v1798
        %1800 = vdwg.mxu0
        %v1801 = vadd.f32 %v1651, %v1754
        %v1802 = vadd.f32 %v1652, %v1757
        %v1803 = vadd.f32 %v1653, %v1760
        %v1804 = vadd.f32 %v1654, %v1763
        %v1805 = vadd.f32 %v1655, %v1766
        %v1806 = vadd.f32 %v1656, %v1769
        %v1807 = vadd.f32 %v1657, %v1772
        %v1808 = vadd.f32 %v1658, %v1775
        %v1809 = vadd.f32 %v1659, %v1778
        %v1810 = vadd.f32 %v1660, %v1781
        %v1811 = vadd.f32 %v1661, %v1784
        %v1812 = vadd.f32 %v1662, %v1787
        %v1813 = vadd.f32 %v1663, %v1790
        %v1814 = vadd.f32 %v1664, %v1793
        %v1815 = vadd.f32 %v1665, %v1796
        %v1816 = vadd.f32 %v1666, %v1799
        %v1817 = vsel %vm417, %v1801, 0.0
        %v1818 = vsel %vm417, %v1802, 0.0
        %v1819 = vadd.f32 %v1817, %v1818
        %v1820 = vsel %vm417, %v1803, 0.0
        %v1821 = vadd.f32 %v1819, %v1820
        %v1822 = vsel %vm417, %v1804, 0.0
        %v1823 = vadd.f32 %v1821, %v1822
        %v1824 = vsel %vm417, %v1805, 0.0
        %v1825 = vadd.f32 %v1823, %v1824
        %v1826 = vsel %vm417, %v1806, 0.0
        %v1827 = vadd.f32 %v1825, %v1826
        %v1828 = vsel %vm417, %v1807, 0.0
        %v1829 = vadd.f32 %v1827, %v1828
        %v1830 = vsel %vm417, %v1808, 0.0
        %v1831 = vadd.f32 %v1829, %v1830
        %v1832 = vsel %vm417, %v1809, 0.0
        %v1833 = vadd.f32 %v1831, %v1832
        %v1834 = vsel %vm417, %v1810, 0.0
        %v1835 = vadd.f32 %v1833, %v1834
        %v1836 = vsel %vm417, %v1811, 0.0
        %v1837 = vadd.f32 %v1835, %v1836
        %v1838 = vsel %vm417, %v1812, 0.0
        %v1839 = vadd.f32 %v1837, %v1838
        %v1840 = vsel %vm417, %v1813, 0.0
        %v1841 = vadd.f32 %v1839, %v1840
        %v1842 = vsel %vm417, %v1814, 0.0
        %v1843 = vadd.f32 %v1841, %v1842
        %v1844 = vsel %vm417, %v1815, 0.0
        %v1845 = vadd.f32 %v1843, %v1844
        %v1846 = vsel %vm417, %v1816, 0.0
        %v1847 = vadd.f32 %v1845, %v1846
        %v1848 = vrot.slane %v1847, 4
        %v1849 = vadd.f32 %v1847, %v1848
        %v1850 = vrot.slane %v1849, 2
        %v1851 = vadd.f32 %v1849, %v1850
        %v1852 = vrot.slane %v1851, 1
        %v1853 = vadd.f32 %v1851, %v1852
        %vm1854 = vcmask 253952
        %1855 = vst.msk [vmem:[%s406] sm:$0x1] %vm1854, %v1853
        %v1856 = vmul.f32 %v1801, %v1801
        %v1857 = vmul.f32 %v1802, %v1802
        %v1858 = vmul.f32 %v1803, %v1803
        %v1859 = vmul.f32 %v1804, %v1804
        %v1860 = vmul.f32 %v1805, %v1805
        %v1861 = vmul.f32 %v1806, %v1806
        %v1862 = vmul.f32 %v1807, %v1807
        %v1863 = vmul.f32 %v1808, %v1808
        %v1864 = vmul.f32 %v1809, %v1809
        %v1865 = vmul.f32 %v1810, %v1810
        %v1866 = vmul.f32 %v1811, %v1811
        %v1867 = vmul.f32 %v1812, %v1812
        %v1868 = vmul.f32 %v1813, %v1813
        %v1869 = vmul.f32 %v1814, %v1814
        %v1870 = vmul.f32 %v1815, %v1815
        %v1871 = vmul.f32 %v1816, %v1816
        %v1872 = vsel %vm417, %v1856, 0.0
        %v1873 = vsel %vm417, %v1857, 0.0
        %v1874 = vadd.f32 %v1872, %v1873
        %v1875 = vsel %vm417, %v1858, 0.0
        %v1876 = vadd.f32 %v1874, %v1875
        %v1877 = vsel %vm417, %v1859, 0.0
        %v1878 = vadd.f32 %v1876, %v1877
        %v1879 = vsel %vm417, %v1860, 0.0
        %v1880 = vadd.f32 %v1878, %v1879
        %v1881 = vsel %vm417, %v1861, 0.0
        %v1882 = vadd.f32 %v1880, %v1881
        %v1883 = vsel %vm417, %v1862, 0.0
        %v1884 = vadd.f32 %v1882, %v1883
        %v1885 = vsel %vm417, %v1863, 0.0
        %v1886 = vadd.f32 %v1884, %v1885
        %v1887 = vsel %vm417, %v1864, 0.0
        %v1888 = vadd.f32 %v1886, %v1887
        %v1889 = vsel %vm417, %v1865, 0.0
        %v1890 = vadd.f32 %v1888, %v1889
        %v1891 = vsel %vm417, %v1866, 0.0
        %v1892 = vadd.f32 %v1890, %v1891
        %v1893 = vsel %vm417, %v1867, 0.0
        %v1894 = vadd.f32 %v1892, %v1893
        %v1895 = vsel %vm417, %v1868, 0.0
        %v1896 = vadd.f32 %v1894, %v1895
        %v1897 = vsel %vm417, %v1869, 0.0
        %v1898 = vadd.f32 %v1896, %v1897
        %v1899 = vsel %vm417, %v1870, 0.0
        %v1900 = vadd.f32 %v1898, %v1899
        %v1901 = vsel %vm417, %v1871, 0.0
        %v1902 = vadd.f32 %v1900, %v1901
        %v1903 = vrot.slane %v1902, 4
        %v1904 = vadd.f32 %v1902, %v1903
        %v1905 = vrot.slane %v1904, 2
        %v1906 = vadd.f32 %v1904, %v1905
        %v1907 = vrot.slane %v1906, 1
        %v1908 = vadd.f32 %v1906, %v1907
        %1909 = vst.msk [vmem:[%s406 + $0x1] sm:$0x1] %vm1854, %v1908
        %1910 = vst.msk [vmem:[%s399] sm:$0xff] %vm417, %v1801
        %1911 = vst.msk [vmem:[%s399 + $0x8] sm:$0xff] %vm417, %v1802
        %1912 = vst.msk [vmem:[%s399 + $0x10] sm:$0xff] %vm417, %v1803
        %1913 = vst.msk [vmem:[%s399 + $0x18] sm:$0xff] %vm417, %v1804
        %1914 = vst.msk [vmem:[%s399 + $0x20] sm:$0xff] %vm417, %v1805
        %1915 = vst.msk [vmem:[%s399 + $0x28] sm:$0xff] %vm417, %v1806
        %1916 = vst.msk [vmem:[%s399 + $0x30] sm:$0xff] %vm417, %v1807
        %1917 = vst.msk [vmem:[%s399 + $0x38] sm:$0xff] %vm417, %v1808
        %1918 = vst.msk [vmem:[%s399 + $0x40] sm:$0xff] %vm417, %v1809
        %1919 = vst.msk [vmem:[%s399 + $0x48] sm:$0xff] %vm417, %v1810
        %1920 = vst.msk [vmem:[%s399 + $0x50] sm:$0xff] %vm417, %v1811
        %1921 = vst.msk [vmem:[%s399 + $0x58] sm:$0xff] %vm417, %v1812
        %1922 = vst.msk [vmem:[%s399 + $0x60] sm:$0xff] %vm417, %v1813
        %1923 = vst.msk [vmem:[%s399 + $0x68] sm:$0xff] %vm417, %v1814
        %1924 = vst.msk [vmem:[%s399 + $0x70] sm:$0xff] %vm417, %v1815
        %1925 = vst.msk [vmem:[%s399 + $0x78] sm:$0xff] %vm417, %v1816
        %s1926 = sand.u32 %s173, 1
        %s1927 = scalar_lea.sflag [#allocation5], %s1926
        %s1928 = sand.u32 %s173, 1
        %s1929 = smul.addr %s1928, 128
        %s1930 = scalar_lea.vmem [#allocation11], %s1929
        %s1931 = sand.u32 %s201, 1
        %s1932 = scalar_lea.sflag [#allocation13], %s1931
        %s1933 = sand.u32 %s201, 1
        %s1934 = smul.addr %s1933, 2
        %s1935 = scalar_lea.vmem [#allocation12], %s1934
        // Predicated region
        $region61: #{tpu_custom_call.1} parent=35 // pred_check
          %p1936 = pneg %p183
        $region62: #{tpu_custom_call.1} parent=35 // pred_check_branch
          %1938 = sbr.rel (%p1936) target = $region64
        $region63: #{tpu_custom_call.1} parent=35 // pred_region
          %s1939 = smul.u32 8, %s35
          %1941 = vsyncadd %s1927, 0
          %s1942 = smul.addr %s1939, 2
          %s1943 = smul.addr %s34, 32
          %s1944 = sadd.s32 %s1942, %s1943
          %s1945 = smul.addr %s1944, 8
          %s1946 = scalar_lea.hbm %s4, %s1945
          %s1947 = sshll.u32 %s1930, 4
          %s1948 = int_to_ptr.vmem [resolvable:$true] %s1947
          %s1949 = sshll.u32 %s1946, 4
          %s1950 = int_to_ptr.hbm [resolvable:$true] %s1949
          %1955 = dma.vmem_to_hbm [thread:$0]  %s1948, 2048, %s1950, %s1927, 128, 128, 8
        $region64: #{tpu_custom_call.1} parent=35 // pred_fallthru
          _
        // Predicated region
        $region65: #{tpu_custom_call.1} parent=35 // pred_check
          %p1956 = pneg %p211
        $region66: #{tpu_custom_call.1} parent=35 // pred_check_branch
          %1958 = sbr.rel (%p1956) target = $region68
        $region67: #{tpu_custom_call.1} parent=35 // pred_region
          %1960 = vsyncadd %s1932, 0
          %s1961 = smul.addr %s34, 2
          %s1962 = sadd.s32 %s35, %s1961
          %s1963 = smul.addr %s1962, 2
          %s1964 = scalar_lea.hbm %s5, %s1963
          %s1966 = sshll.u32 %s1935, 4
          %s1967 = int_to_ptr.vmem [resolvable:$true] %s1966
          %s1968 = sshll.u32 %s1964, 4
          %s1969 = int_to_ptr.hbm [resolvable:$true] %s1968
          %1971 = dma.vmem_to_hbm [thread:$0]  %s1967, 32, %s1969, %s1932
        $region68: #{tpu_custom_call.1} parent=35 // pred_fallthru
          _
      $region36: #{tpu_custom_call.1} parent=5 // pred_fallthru
        _
      %p1972 = scmp.le.s32.totalorder 2, %s25
      // Predicated region
      $region69: #{tpu_custom_call.1} parent=5 // pred_check
        %p1973 = pneg %p1972
      $region70: #{tpu_custom_call.1} parent=5 // pred_check_branch
        %1975 = sbr.rel (%p1973) target = $region72
      $region71: #{tpu_custom_call.1} parent=5 // pred_region
        %s1976 = ssub.s32 %s25, 2
        // Predicated region
        $region73: #{tpu_custom_call.1} parent=71 // pred_check
          %p1977 = pneg %p189
        $region74: #{tpu_custom_call.1} parent=71 // pred_check_branch
          %1979 = sbr.rel (%p1977) target = $region76
        $region75: #{tpu_custom_call.1} parent=71 // pred_region
          %s1980 = sand.u32 %s174, 1
          %s1981 = scalar_lea.sflag [#allocation5], %s1980
          %s1982 = sand.u32 %s174, 1
          %s1983 = smul.addr %s1982, 128
          %s1984 = scalar_lea.vmem [#allocation11], %s1983
          %1986 = dma.done %s1981, 2048
        $region76: #{tpu_custom_call.1} parent=71 // pred_fallthru
          _
        // Predicated region
        $region77: #{tpu_custom_call.1} parent=71 // pred_check
          %p1987 = pneg %p217
        $region78: #{tpu_custom_call.1} parent=71 // pred_check_branch
          %1989 = sbr.rel (%p1987) target = $region80
        $region79: #{tpu_custom_call.1} parent=71 // pred_region
          %s1990 = sand.u32 %s202, 1
          %s1991 = scalar_lea.sflag [#allocation13], %s1990
          %s1992 = sand.u32 %s202, 1
          %s1993 = smul.addr %s1992, 2
          %s1994 = scalar_lea.vmem [#allocation12], %s1993
          %1996 = dma.done %s1991, 32
        $region80: #{tpu_custom_call.1} parent=71 // pred_fallthru
          _
      $region72: #{tpu_custom_call.1} parent=5 // pred_fallthru
        _
    $region6: #{tpu_custom_call.1} parent=1 // loop_footer
      %s29 = sadd.s32 1, %s25
    $region7: #{tpu_custom_call.1} parent=1 // loop_footer_branch
      %24 = sbr.rel target = $region3
    $region8: #{tpu_custom_call.1} parent=1 // loop_exit
      _
    %1997 = vsyncpa [#allocation4], 1
    %s1998 = scalar_lea.sflag [#allocation4], 1
    %1999 = vsyncpa %s1998, 1
    %2000 = vsyncpa [#allocation7], 1
    %s2001 = scalar_lea.sflag [#allocation7], 1
    %2002 = vsyncpa %s2001, 1
    %2003 = vsyncpa [#allocation10], 1
    %2004 = vsyncpa [#allocation5], 1
    %s2005 = scalar_lea.sflag [#allocation5], 1
    %2006 = vsyncpa %s2005, 1
    %2007 = vsyncpa [#allocation13], 1
    %s2008 = scalar_lea.sflag [#allocation13], 1
    %2009 = vsyncpa %s2008, 1

</llo_original>
